<compile_context>
chip_gen: v7x
topology: tpu7x:2x2x1
jax: 0.10.0
libtpu: 0.0.40
codegen_flags: <defaults>
</compile_context>

<pallas_src>
import jax
import jax.numpy as jnp
from jax.experimental import pallas as pl
from jax.experimental.pallas import tpu as pltpu

KSIZE = 7
PAD = 3


def _sa_kernel(w_ref, b_ref, x_ref, o_ref, slab_ref):
    # w_ref   : (49, G*Wp) f32 VMEM -- per-tap, lane-replicated conv weights
    #                                  (avg weights on the first Nb*Wp lanes,
    #                                   max weights on the last Nb*Wp lanes)
    # b_ref   : (1,)        f32 SMEM -- conv bias
    # x_ref   : (Nb, C, H, W)  VMEM  -- Nb batch elements
    # o_ref   : (Nb, 1, H, W)  VMEM
    # slab_ref: (Hp, G*Wp + 2*PAD) f32 VMEM -- lane-stacked reflect-padded maps
    Nb, C, H, W = x_ref.shape
    Hp = H + 2 * PAD
    Wp = W + 2 * PAD
    G = 2 * Nb
    Wtot = G * Wp

    # Zero the overflow tail lanes (read only by the largest dw shifts; the
    # contaminated accumulator lanes are never read, this just keeps them
    # deterministic).
    slab_ref[:, Wtot:Wtot + 2 * PAD] = jnp.zeros((Hp, 2 * PAD), jnp.float32)

    # ---- channel mean / max per batch element, written reflect-padded into
    #      the lane-stacked slab.  Group layout along lanes:
    #      [avg_0 .. avg_{Nb-1}, max_0 .. max_{Nb-1}], each group Wp lanes.
    for b in range(Nb):
        s = x_ref[b, 0].astype(jnp.float32)          # (H, W)
        m = s
        for c in range(1, C):
            xc = x_ref[b, c].astype(jnp.float32)
            s = s + xc
            m = jnp.maximum(m, xc)
        for half, r in enumerate((s * (1.0 / C), m)):  # (avg, max)
            c0 = (half * Nb + b) * Wp
            # interior: ONE block store
            slab_ref[PAD:PAD + H, c0 + PAD:c0 + PAD + W] = r
            # reflected rows (sublane slices of r); corners are finished by
            # the column reflection below (row-then-column == torch 'reflect')
            for i in range(1, PAD + 1):
                slab_ref[PAD - i:PAD - i + 1, c0 + PAD:c0 + PAD + W] = r[i:i + 1, :]
                slab_ref[PAD + H - 1 + i:PAD + H + i, c0 + PAD:c0 + PAD + W] = (
                    r[H - 1 - i:H - i, :])
            # reflected columns over the full height (corners included)
            for j in range(1, PAD + 1):
                slab_ref[:, c0 + PAD - j:c0 + PAD - j + 1] = (
                    slab_ref[:, c0 + PAD + j:c0 + PAD + j + 1])
                slab_ref[:, c0 + PAD + W - 1 + j:c0 + PAD + W + j] = (
                    slab_ref[:, c0 + PAD + W - 1 - j:c0 + PAD + W - j])

    # ---- 7x7 Conv2d(2 -> 1) as a single 49-tap shift-MAC over ALL stacked
    #      maps at once (VPU; 1 output channel -> MXU would be wasted).
    p = slab_ref[...]                                   # (Hp, Wtot + 2*PAD)
    shifted = [p[:, dw:dw + Wtot] for dw in range(KSIZE)]  # hoisted lane shifts
    acc = jnp.zeros((H, Wtot), jnp.float32)
    for dh in range(KSIZE):
        for dw in range(KSIZE):
            t = dh * KSIZE + dw
            acc = acc + shifted[dw][dh:dh + H, :] * w_ref[t:t + 1, :]

    # ---- combine avg/max halves (one lane-slice add), add bias, and write
    #      ONE (H, W) block per batch element.
    half_w = Nb * Wp
    comb = acc[:, 0:half_w] + acc[:, half_w:2 * half_w] + b_ref[0]
    for b in range(Nb):
        o_ref[b, 0] = comb[:, b * Wp:b * Wp + W].astype(o_ref.dtype)


def _pick_block_n(N):
    # Largest Nb in {8, 4, 2} that divides N while keeping the grid extent
    # >= 2 (so dimension_semantics=('parallel',) can still use both v7x TCs);
    # otherwise fall back to Nb=1.
    for nb in (8, 4, 2):
        if N % nb == 0 and N // nb >= 2:
            return nb
    return 1


def spatial_attention(x, weight, bias):
    """x: (N, C, H, W); weight: (2, 7, 7); bias: (1,). Returns (N, 1, H, W)."""
    N, C, H, W = x.shape
    assert H >= PAD + 1 and W >= PAD + 1, "reflect padding requires H, W >= 4"
    Nb = _pick_block_n(N)
    G = 2 * Nb
    Hp, Wp = H + 2 * PAD, W + 2 * PAD
    Wtot = G * Wp

    # Per-tap, lane-replicated weight rows: avg weights on the first Nb*Wp
    # lanes, max weights on the last Nb*Wp lanes (matches the slab layout).
    w_flat = weight.reshape(2, KSIZE * KSIZE).astype(jnp.float32)   # (2, 49)
    wmat = jnp.concatenate(
        [jnp.tile(w_flat[0][:, None], (1, Nb * Wp)),
         jnp.tile(w_flat[1][:, None], (1, Nb * Wp))], axis=1)       # (49, Wtot)
    b_arr = bias.astype(jnp.float32).reshape(1)

    out = pl.pallas_call(
        _sa_kernel,
        out_shape=jax.ShapeDtypeStruct((N, 1, H, W), x.dtype),
        grid_spec=pltpu.PrefetchScalarGridSpec(
            num_scalar_prefetch=0,
            grid=(N // Nb,),
            in_specs=[
                pl.BlockSpec((KSIZE * KSIZE, Wtot), lambda n: (0, 0)),   # weights
                pl.BlockSpec(memory_space=pltpu.MemorySpace.SMEM),       # bias
                pl.BlockSpec((Nb, C, H, W), lambda n: (n, 0, 0, 0)),     # x
            ],
            out_specs=pl.BlockSpec((Nb, 1, H, W), lambda n: (n, 0, 0, 0)),
            scratch_shapes=[
                pltpu.VMEM((Hp, Wtot + 2 * PAD), jnp.float32),  # stacked padded maps
            ],
        ),
        compiler_params=pltpu.CompilerParams(
            dimension_semantics=("parallel",)),
    )(wmat, b_arr, x)

    return out


def _reference(x, weight, bias):
    # Pure-JAX reference for validation (no sigmoid — the module returns the
    # conv output directly).
    x_avg = jnp.mean(x, axis=1, keepdims=True)
    x_max = jnp.max(x, axis=1, keepdims=True)
    x2 = jnp.concatenate([x_avg, x_max], axis=1)             # (N, 2, H, W)
    x2p = jnp.pad(x2, ((0, 0), (0, 0), (PAD, PAD), (PAD, PAD)), mode="reflect")
    out = jax.lax.conv_general_dilated(
        x2p, weight[None], window_strides=(1, 1), padding="VALID",
        dimension_numbers=("NCHW", "OIHW", "NCHW"))
    return out + bias[None, :, None, None]


if __name__ == "__main__":
    key = jax.random.PRNGKey(0)
    kx, kw, kb = jax.random.split(key, 3)

    N, C, H, W = 2, 4, 16, 16
    x = jax.random.normal(kx, (N, C, H, W), dtype=jnp.float32)

    # Conv2d(2, 1, 7) parameters: weight (2, 7, 7) (cin, kh, kw), bias (1,)
    fan_in = 2 * KSIZE * KSIZE
    bound = 1.0 / (fan_in ** 0.5)
    weight = jax.random.uniform(kw, (2, KSIZE, KSIZE), jnp.float32,
                                minval=-bound, maxval=bound)
    bias = jax.random.uniform(kb, (1,), jnp.float32, minval=-bound, maxval=bound)

    out = spatial_attention(x, weight, bias)
    out = jax.block_until_ready(out)

    ref = _reference(x, weight, bias)
    assert out.shape == (N, 1, H, W)
    assert jnp.allclose(out, ref, atol=1e-4, rtol=1e-4)

    print("KERNEL_OK")
</pallas_src>

<mosaic_0001>
module attributes {stable_mosaic.version = 11 : i64} {
  func.func @_sa_kernel(%arg0: i32, %arg1: memref<49x44xf32, #tpu.memory_space<vmem>>, %arg2: memref<1xf32, #tpu.memory_space<smem>>, %arg3: memref<1x4x16x16xf32, #tpu.memory_space<vmem>>, %arg4: memref<1x1x16x16xf32, #tpu.memory_space<vmem>>, %arg5: memref<22x50xf32, #tpu.memory_space<vmem>>) attributes {dimension_semantics = [#tpu.dimension_semantics<parallel>], iteration_bounds = array<i64: 2>, scalar_prefetch = 0 : i64, scratch_operands = 1 : i64, tpu.core_type = #tpu.core_type<tc>, window_params = [{pipeline_mode = #tpu.pipeline_mode<synchronous>, transform_indices = @transform_0, window_bounds = array<i64: 49, 44>}, {transform_indices = @transform_1, window_bounds = array<i64: 1>}, {transform_indices = @transform_2, window_bounds = array<i64: 1, 4, 16, 16>}, {transform_indices = @transform_3, window_bounds = array<i64: 1, 1, 16, 16>}]} {
    %cst = arith.constant 0.000000e+00 : f32
    %0 = vector.broadcast %cst : f32 to vector<22x6xf32>
    %c0 = arith.constant 0 : index
    %c44 = arith.constant 44 : index
    %1 = vector.load %arg5[%c0, %c44] : memref<22x50xf32, #tpu.memory_space<vmem>>, vector<22x6xf32>
    tpu.vector_store %arg5[%c0, %c44], %0 {strides = array<i32>} : memref<22x50xf32, #tpu.memory_space<vmem>>, vector<22x6xf32>,
    %c0_0 = arith.constant 0 : index
    %c0_1 = arith.constant 0 : index
    %c0_2 = arith.constant 0 : index
    %c0_3 = arith.constant 0 : index
    %2 = vector.load %arg3[%c0_0, %c0_1, %c0_2, %c0_3] : memref<1x4x16x16xf32, #tpu.memory_space<vmem>>, vector<1x1x16x16xf32>
    %3 = vector.shape_cast %2 : vector<1x1x16x16xf32> to vector<16x16xf32>
    %c0_4 = arith.constant 0 : index
    %c1 = arith.constant 1 : index
    %c0_5 = arith.constant 0 : index
    %c0_6 = arith.constant 0 : index
    %4 = vector.load %arg3[%c0_4, %c1, %c0_5, %c0_6] : memref<1x4x16x16xf32, #tpu.memory_space<vmem>>, vector<1x1x16x16xf32>
    %5 = vector.shape_cast %4 : vector<1x1x16x16xf32> to vector<16x16xf32>
    %6 = arith.addf %3, %5 : vector<16x16xf32>
    %7 = arith.maximumf %3, %5 : vector<16x16xf32>
    %c0_7 = arith.constant 0 : index
    %c2 = arith.constant 2 : index
    %c0_8 = arith.constant 0 : index
    %c0_9 = arith.constant 0 : index
    %8 = vector.load %arg3[%c0_7, %c2, %c0_8, %c0_9] : memref<1x4x16x16xf32, #tpu.memory_space<vmem>>, vector<1x1x16x16xf32>
    %9 = vector.shape_cast %8 : vector<1x1x16x16xf32> to vector<16x16xf32>
    %10 = arith.addf %6, %9 : vector<16x16xf32>
    %11 = arith.maximumf %7, %9 : vector<16x16xf32>
    %c0_10 = arith.constant 0 : index
    %c3 = arith.constant 3 : index
    %c0_11 = arith.constant 0 : index
    %c0_12 = arith.constant 0 : index
    %12 = vector.load %arg3[%c0_10, %c3, %c0_11, %c0_12] : memref<1x4x16x16xf32, #tpu.memory_space<vmem>>, vector<1x1x16x16xf32>
    %13 = vector.shape_cast %12 : vector<1x1x16x16xf32> to vector<16x16xf32>
    %14 = arith.addf %10, %13 : vector<16x16xf32>
    %15 = arith.maximumf %11, %13 : vector<16x16xf32>
    %cst_13 = arith.constant 2.500000e-01 : f32
    %16 = vector.broadcast %cst_13 : f32 to vector<16x16xf32>
    %17 = arith.mulf %14, %16 : vector<16x16xf32>
    %c3_14 = arith.constant 3 : index
    %c3_15 = arith.constant 3 : index
    %18 = vector.load %arg5[%c3_14, %c3_15] : memref<22x50xf32, #tpu.memory_space<vmem>>, vector<16x16xf32>
    tpu.vector_store %arg5[%c3_14, %c3_15], %17 {strides = array<i32>} : memref<22x50xf32, #tpu.memory_space<vmem>>, vector<16x16xf32>,
    %19 = vector.extract_strided_slice %17 {offsets = [1, 0], sizes = [1, 16], strides = [1, 1]} : vector<16x16xf32> to vector<1x16xf32>
    %c2_16 = arith.constant 2 : index
    %c3_17 = arith.constant 3 : index
    %20 = vector.load %arg5[%c2_16, %c3_17] : memref<22x50xf32, #tpu.memory_space<vmem>>, vector<1x16xf32>
    tpu.vector_store %arg5[%c2_16, %c3_17], %19 {strides = array<i32>} : memref<22x50xf32, #tpu.memory_space<vmem>>, vector<1x16xf32>,
    %21 = vector.extract_strided_slice %17 {offsets = [14, 0], sizes = [1, 16], strides = [1, 1]} : vector<16x16xf32> to vector<1x16xf32>
    %c19 = arith.constant 19 : index
    %c3_18 = arith.constant 3 : index
    %22 = vector.load %arg5[%c19, %c3_18] : memref<22x50xf32, #tpu.memory_space<vmem>>, vector<1x16xf32>
    tpu.vector_store %arg5[%c19, %c3_18], %21 {strides = array<i32>} : memref<22x50xf32, #tpu.memory_space<vmem>>, vector<1x16xf32>,
    %23 = vector.extract_strided_slice %17 {offsets = [2, 0], sizes = [1, 16], strides = [1, 1]} : vector<16x16xf32> to vector<1x16xf32>
    %c1_19 = arith.constant 1 : index
    %c3_20 = arith.constant 3 : index
    %24 = vector.load %arg5[%c1_19, %c3_20] : memref<22x50xf32, #tpu.memory_space<vmem>>, vector<1x16xf32>
    tpu.vector_store %arg5[%c1_19, %c3_20], %23 {strides = array<i32>} : memref<22x50xf32, #tpu.memory_space<vmem>>, vector<1x16xf32>,
    %25 = vector.extract_strided_slice %17 {offsets = [13, 0], sizes = [1, 16], strides = [1, 1]} : vector<16x16xf32> to vector<1x16xf32>
    %c20 = arith.constant 20 : index
    %c3_21 = arith.constant 3 : index
    %26 = vector.load %arg5[%c20, %c3_21] : memref<22x50xf32, #tpu.memory_space<vmem>>, vector<1x16xf32>
    tpu.vector_store %arg5[%c20, %c3_21], %25 {strides = array<i32>} : memref<22x50xf32, #tpu.memory_space<vmem>>, vector<1x16xf32>,
    %27 = vector.extract_strided_slice %17 {offsets = [3, 0], sizes = [1, 16], strides = [1, 1]} : vector<16x16xf32> to vector<1x16xf32>
    %c0_22 = arith.constant 0 : index
    %c3_23 = arith.constant 3 : index
    %28 = vector.load %arg5[%c0_22, %c3_23] : memref<22x50xf32, #tpu.memory_space<vmem>>, vector<1x16xf32>
    tpu.vector_store %arg5[%c0_22, %c3_23], %27 {strides = array<i32>} : memref<22x50xf32, #tpu.memory_space<vmem>>, vector<1x16xf32>,
    %29 = vector.extract_strided_slice %17 {offsets = [12, 0], sizes = [1, 16], strides = [1, 1]} : vector<16x16xf32> to vector<1x16xf32>
    %c21 = arith.constant 21 : index
    %c3_24 = arith.constant 3 : index
    %30 = vector.load %arg5[%c21, %c3_24] : memref<22x50xf32, #tpu.memory_space<vmem>>, vector<1x16xf32>
    tpu.vector_store %arg5[%c21, %c3_24], %29 {strides = array<i32>} : memref<22x50xf32, #tpu.memory_space<vmem>>, vector<1x16xf32>,
    %c0_25 = arith.constant 0 : index
    %c4 = arith.constant 4 : index
    %31 = vector.load %arg5[%c0_25, %c4] : memref<22x50xf32, #tpu.memory_space<vmem>>, vector<22x1xf32>
    %c0_26 = arith.constant 0 : index
    %c2_27 = arith.constant 2 : index
    %32 = vector.load %arg5[%c0_26, %c2_27] : memref<22x50xf32, #tpu.memory_space<vmem>>, vector<22x1xf32>
    tpu.vector_store %arg5[%c0_26, %c2_27], %31 {strides = array<i32>} : memref<22x50xf32, #tpu.memory_space<vmem>>, vector<22x1xf32>,
    %c0_28 = arith.constant 0 : index
    %c17 = arith.constant 17 : index
    %33 = vector.load %arg5[%c0_28, %c17] : memref<22x50xf32, #tpu.memory_space<vmem>>, vector<22x1xf32>
    %c0_29 = arith.constant 0 : index
    %c19_30 = arith.constant 19 : index
    %34 = vector.load %arg5[%c0_29, %c19_30] : memref<22x50xf32, #tpu.memory_space<vmem>>, vector<22x1xf32>
    tpu.vector_store %arg5[%c0_29, %c19_30], %33 {strides = array<i32>} : memref<22x50xf32, #tpu.memory_space<vmem>>, vector<22x1xf32>,
    %c0_31 = arith.constant 0 : index
    %c5 = arith.constant 5 : index
    %35 = vector.load %arg5[%c0_31, %c5] : memref<22x50xf32, #tpu.memory_space<vmem>>, vector<22x1xf32>
    %c0_32 = arith.constant 0 : index
    %c1_33 = arith.constant 1 : index
    %36 = vector.load %arg5[%c0_32, %c1_33] : memref<22x50xf32, #tpu.memory_space<vmem>>, vector<22x1xf32>
    tpu.vector_store %arg5[%c0_32, %c1_33], %35 {strides = array<i32>} : memref<22x50xf32, #tpu.memory_space<vmem>>, vector<22x1xf32>,
    %c0_34 = arith.constant 0 : index
    %c16 = arith.constant 16 : index
    %37 = vector.load %arg5[%c0_34, %c16] : memref<22x50xf32, #tpu.memory_space<vmem>>, vector<22x1xf32>
    %c0_35 = arith.constant 0 : index
    %c20_36 = arith.constant 20 : index
    %38 = vector.load %arg5[%c0_35, %c20_36] : memref<22x50xf32, #tpu.memory_space<vmem>>, vector<22x1xf32>
    tpu.vector_store %arg5[%c0_35, %c20_36], %37 {strides = array<i32>} : memref<22x50xf32, #tpu.memory_space<vmem>>, vector<22x1xf32>,
    %c0_37 = arith.constant 0 : index
    %c6 = arith.constant 6 : index
    %39 = vector.load %arg5[%c0_37, %c6] : memref<22x50xf32, #tpu.memory_space<vmem>>, vector<22x1xf32>
    %c0_38 = arith.constant 0 : index
    %c0_39 = arith.constant 0 : index
    %40 = vector.load %arg5[%c0_38, %c0_39] : memref<22x50xf32, #tpu.memory_space<vmem>>, vector<22x1xf32>
    tpu.vector_store %arg5[%c0_38, %c0_39], %39 {strides = array<i32>} : memref<22x50xf32, #tpu.memory_space<vmem>>, vector<22x1xf32>,
    %c0_40 = arith.constant 0 : index
    %c15 = arith.constant 15 : index
    %41 = vector.load %arg5[%c0_40, %c15] : memref<22x50xf32, #tpu.memory_space<vmem>>, vector<22x1xf32>
    %c0_41 = arith.constant 0 : index
    %c21_42 = arith.constant 21 : index
    %42 = vector.load %arg5[%c0_41, %c21_42] : memref<22x50xf32, #tpu.memory_space<vmem>>, vector<22x1xf32>
    tpu.vector_store %arg5[%c0_41, %c21_42], %41 {strides = array<i32>} : memref<22x50xf32, #tpu.memory_space<vmem>>, vector<22x1xf32>,
    %c3_43 = arith.constant 3 : index
    %c25 = arith.constant 25 : index
    %43 = vector.load %arg5[%c3_43, %c25] : memref<22x50xf32, #tpu.memory_space<vmem>>, vector<16x16xf32>
    tpu.vector_store %arg5[%c3_43, %c25], %15 {strides = array<i32>} : memref<22x50xf32, #tpu.memory_space<vmem>>, vector<16x16xf32>,
    %44 = vector.extract_strided_slice %15 {offsets = [1, 0], sizes = [1, 16], strides = [1, 1]} : vector<16x16xf32> to vector<1x16xf32>
    %c2_44 = arith.constant 2 : index
    %c25_45 = arith.constant 25 : index
    %45 = vector.load %arg5[%c2_44, %c25_45] : memref<22x50xf32, #tpu.memory_space<vmem>>, vector<1x16xf32>
    tpu.vector_store %arg5[%c2_44, %c25_45], %44 {strides = array<i32>} : memref<22x50xf32, #tpu.memory_space<vmem>>, vector<1x16xf32>,
    %46 = vector.extract_strided_slice %15 {offsets = [14, 0], sizes = [1, 16], strides = [1, 1]} : vector<16x16xf32> to vector<1x16xf32>
    %c19_46 = arith.constant 19 : index
    %c25_47 = arith.constant 25 : index
    %47 = vector.load %arg5[%c19_46, %c25_47] : memref<22x50xf32, #tpu.memory_space<vmem>>, vector<1x16xf32>
    tpu.vector_store %arg5[%c19_46, %c25_47], %46 {strides = array<i32>} : memref<22x50xf32, #tpu.memory_space<vmem>>, vector<1x16xf32>,
    %48 = vector.extract_strided_slice %15 {offsets = [2, 0], sizes = [1, 16], strides = [1, 1]} : vector<16x16xf32> to vector<1x16xf32>
    %c1_48 = arith.constant 1 : index
    %c25_49 = arith.constant 25 : index
    %49 = vector.load %arg5[%c1_48, %c25_49] : memref<22x50xf32, #tpu.memory_space<vmem>>, vector<1x16xf32>
    tpu.vector_store %arg5[%c1_48, %c25_49], %48 {strides = array<i32>} : memref<22x50xf32, #tpu.memory_space<vmem>>, vector<1x16xf32>,
    %50 = vector.extract_strided_slice %15 {offsets = [13, 0], sizes = [1, 16], strides = [1, 1]} : vector<16x16xf32> to vector<1x16xf32>
    %c20_50 = arith.constant 20 : index
    %c25_51 = arith.constant 25 : index
    %51 = vector.load %arg5[%c20_50, %c25_51] : memref<22x50xf32, #tpu.memory_space<vmem>>, vector<1x16xf32>
    tpu.vector_store %arg5[%c20_50, %c25_51], %50 {strides = array<i32>} : memref<22x50xf32, #tpu.memory_space<vmem>>, vector<1x16xf32>,
    %52 = vector.extract_strided_slice %15 {offsets = [3, 0], sizes = [1, 16], strides = [1, 1]} : vector<16x16xf32> to vector<1x16xf32>
    %c0_52 = arith.constant 0 : index
    %c25_53 = arith.constant 25 : index
    %53 = vector.load %arg5[%c0_52, %c25_53] : memref<22x50xf32, #tpu.memory_space<vmem>>, vector<1x16xf32>
    tpu.vector_store %arg5[%c0_52, %c25_53], %52 {strides = array<i32>} : memref<22x50xf32, #tpu.memory_space<vmem>>, vector<1x16xf32>,
    %54 = vector.extract_strided_slice %15 {offsets = [12, 0], sizes = [1, 16], strides = [1, 1]} : vector<16x16xf32> to vector<1x16xf32>
    %c21_54 = arith.constant 21 : index
    %c25_55 = arith.constant 25 : index
    %55 = vector.load %arg5[%c21_54, %c25_55] : memref<22x50xf32, #tpu.memory_space<vmem>>, vector<1x16xf32>
    tpu.vector_store %arg5[%c21_54, %c25_55], %54 {strides = array<i32>} : memref<22x50xf32, #tpu.memory_space<vmem>>, vector<1x16xf32>,
    %c0_56 = arith.constant 0 : index
    %c26 = arith.constant 26 : index
    %56 = vector.load %arg5[%c0_56, %c26] : memref<22x50xf32, #tpu.memory_space<vmem>>, vector<22x1xf32>
    %c0_57 = arith.constant 0 : index
    %c24 = arith.constant 24 : index
    %57 = vector.load %arg5[%c0_57, %c24] : memref<22x50xf32, #tpu.memory_space<vmem>>, vector<22x1xf32>
    tpu.vector_store %arg5[%c0_57, %c24], %56 {strides = array<i32>} : memref<22x50xf32, #tpu.memory_space<vmem>>, vector<22x1xf32>,
    %c0_58 = arith.constant 0 : index
    %c39 = arith.constant 39 : index
    %58 = vector.load %arg5[%c0_58, %c39] : memref<22x50xf32, #tpu.memory_space<vmem>>, vector<22x1xf32>
    %c0_59 = arith.constant 0 : index
    %c41 = arith.constant 41 : index
    %59 = vector.load %arg5[%c0_59, %c41] : memref<22x50xf32, #tpu.memory_space<vmem>>, vector<22x1xf32>
    tpu.vector_store %arg5[%c0_59, %c41], %58 {strides = array<i32>} : memref<22x50xf32, #tpu.memory_space<vmem>>, vector<22x1xf32>,
    %c0_60 = arith.constant 0 : index
    %c27 = arith.constant 27 : index
    %60 = vector.load %arg5[%c0_60, %c27] : memref<22x50xf32, #tpu.memory_space<vmem>>, vector<22x1xf32>
    %c0_61 = arith.constant 0 : index
    %c23 = arith.constant 23 : index
    %61 = vector.load %arg5[%c0_61, %c23] : memref<22x50xf32, #tpu.memory_space<vmem>>, vector<22x1xf32>
    tpu.vector_store %arg5[%c0_61, %c23], %60 {strides = array<i32>} : memref<22x50xf32, #tpu.memory_space<vmem>>, vector<22x1xf32>,
    %c0_62 = arith.constant 0 : index
    %c38 = arith.constant 38 : index
    %62 = vector.load %arg5[%c0_62, %c38] : memref<22x50xf32, #tpu.memory_space<vmem>>, vector<22x1xf32>
    %c0_63 = arith.constant 0 : index
    %c42 = arith.constant 42 : index
    %63 = vector.load %arg5[%c0_63, %c42] : memref<22x50xf32, #tpu.memory_space<vmem>>, vector<22x1xf32>
    tpu.vector_store %arg5[%c0_63, %c42], %62 {strides = array<i32>} : memref<22x50xf32, #tpu.memory_space<vmem>>, vector<22x1xf32>,
    %c0_64 = arith.constant 0 : index
    %c28 = arith.constant 28 : index
    %64 = vector.load %arg5[%c0_64, %c28] : memref<22x50xf32, #tpu.memory_space<vmem>>, vector<22x1xf32>
    %c0_65 = arith.constant 0 : index
    %c22 = arith.constant 22 : index
    %65 = vector.load %arg5[%c0_65, %c22] : memref<22x50xf32, #tpu.memory_space<vmem>>, vector<22x1xf32>
    tpu.vector_store %arg5[%c0_65, %c22], %64 {strides = array<i32>} : memref<22x50xf32, #tpu.memory_space<vmem>>, vector<22x1xf32>,
    %c0_66 = arith.constant 0 : index
    %c37 = arith.constant 37 : index
    %66 = vector.load %arg5[%c0_66, %c37] : memref<22x50xf32, #tpu.memory_space<vmem>>, vector<22x1xf32>
    %c0_67 = arith.constant 0 : index
    %c43 = arith.constant 43 : index
    %67 = vector.load %arg5[%c0_67, %c43] : memref<22x50xf32, #tpu.memory_space<vmem>>, vector<22x1xf32>
    tpu.vector_store %arg5[%c0_67, %c43], %66 {strides = array<i32>} : memref<22x50xf32, #tpu.memory_space<vmem>>, vector<22x1xf32>,
    %c0_68 = arith.constant 0 : index
    %c0_69 = arith.constant 0 : index
    %68 = vector.load %arg5[%c0_68, %c0_69] : memref<22x50xf32, #tpu.memory_space<vmem>>, vector<22x50xf32>
    %69 = vector.extract_strided_slice %68 {offsets = [0, 0], sizes = [22, 44], strides = [1, 1]} : vector<22x50xf32> to vector<22x44xf32>
    %70 = vector.extract_strided_slice %68 {offsets = [0, 1], sizes = [22, 44], strides = [1, 1]} : vector<22x50xf32> to vector<22x44xf32>
    %71 = vector.extract_strided_slice %68 {offsets = [0, 2], sizes = [22, 44], strides = [1, 1]} : vector<22x50xf32> to vector<22x44xf32>
    %72 = vector.extract_strided_slice %68 {offsets = [0, 3], sizes = [22, 44], strides = [1, 1]} : vector<22x50xf32> to vector<22x44xf32>
    %73 = vector.extract_strided_slice %68 {offsets = [0, 4], sizes = [22, 44], strides = [1, 1]} : vector<22x50xf32> to vector<22x44xf32>
    %74 = vector.extract_strided_slice %68 {offsets = [0, 5], sizes = [22, 44], strides = [1, 1]} : vector<22x50xf32> to vector<22x44xf32>
    %75 = vector.extract_strided_slice %68 {offsets = [0, 6], sizes = [22, 44], strides = [1, 1]} : vector<22x50xf32> to vector<22x44xf32>
    %cst_70 = arith.constant 0.000000e+00 : f32
    %76 = vector.broadcast %cst_70 : f32 to vector<16x44xf32>
    %77 = vector.extract_strided_slice %69 {offsets = [0, 0], sizes = [16, 44], strides = [1, 1]} : vector<22x44xf32> to vector<16x44xf32>
    %c0_71 = arith.constant 0 : index
    %c0_72 = arith.constant 0 : index
    %78 = vector.load %arg1[%c0_71, %c0_72] : memref<49x44xf32, #tpu.memory_space<vmem>>, vector<1x44xf32>
    %79 = vector.broadcast %78 : vector<1x44xf32> to vector<16x44xf32>
    %80 = arith.mulf %77, %79 : vector<16x44xf32>
    %81 = arith.addf %76, %80 : vector<16x44xf32>
    %82 = vector.extract_strided_slice %70 {offsets = [0, 0], sizes = [16, 44], strides = [1, 1]} : vector<22x44xf32> to vector<16x44xf32>
    %c1_73 = arith.constant 1 : index
    %c0_74 = arith.constant 0 : index
    %83 = vector.load %arg1[%c1_73, %c0_74] : memref<49x44xf32, #tpu.memory_space<vmem>>, vector<1x44xf32>
    %84 = vector.broadcast %83 : vector<1x44xf32> to vector<16x44xf32>
    %85 = arith.mulf %82, %84 : vector<16x44xf32>
    %86 = arith.addf %81, %85 : vector<16x44xf32>
    %87 = vector.extract_strided_slice %71 {offsets = [0, 0], sizes = [16, 44], strides = [1, 1]} : vector<22x44xf32> to vector<16x44xf32>
    %c2_75 = arith.constant 2 : index
    %c0_76 = arith.constant 0 : index
    %88 = vector.load %arg1[%c2_75, %c0_76] : memref<49x44xf32, #tpu.memory_space<vmem>>, vector<1x44xf32>
    %89 = vector.broadcast %88 : vector<1x44xf32> to vector<16x44xf32>
    %90 = arith.mulf %87, %89 : vector<16x44xf32>
    %91 = arith.addf %86, %90 : vector<16x44xf32>
    %92 = vector.extract_strided_slice %72 {offsets = [0, 0], sizes = [16, 44], strides = [1, 1]} : vector<22x44xf32> to vector<16x44xf32>
    %c3_77 = arith.constant 3 : index
    %c0_78 = arith.constant 0 : index
    %93 = vector.load %arg1[%c3_77, %c0_78] : memref<49x44xf32, #tpu.memory_space<vmem>>, vector<1x44xf32>
    %94 = vector.broadcast %93 : vector<1x44xf32> to vector<16x44xf32>
    %95 = arith.mulf %92, %94 : vector<16x44xf32>
    %96 = arith.addf %91, %95 : vector<16x44xf32>
    %97 = vector.extract_strided_slice %73 {offsets = [0, 0], sizes = [16, 44], strides = [1, 1]} : vector<22x44xf32> to vector<16x44xf32>
    %c4_79 = arith.constant 4 : index
    %c0_80 = arith.constant 0 : index
    %98 = vector.load %arg1[%c4_79, %c0_80] : memref<49x44xf32, #tpu.memory_space<vmem>>, vector<1x44xf32>
    %99 = vector.broadcast %98 : vector<1x44xf32> to vector<16x44xf32>
    %100 = arith.mulf %97, %99 : vector<16x44xf32>
    %101 = arith.addf %96, %100 : vector<16x44xf32>
    %102 = vector.extract_strided_slice %74 {offsets = [0, 0], sizes = [16, 44], strides = [1, 1]} : vector<22x44xf32> to vector<16x44xf32>
    %c5_81 = arith.constant 5 : index
    %c0_82 = arith.constant 0 : index
    %103 = vector.load %arg1[%c5_81, %c0_82] : memref<49x44xf32, #tpu.memory_space<vmem>>, vector<1x44xf32>
    %104 = vector.broadcast %103 : vector<1x44xf32> to vector<16x44xf32>
    %105 = arith.mulf %102, %104 : vector<16x44xf32>
    %106 = arith.addf %101, %105 : vector<16x44xf32>
    %107 = vector.extract_strided_slice %75 {offsets = [0, 0], sizes = [16, 44], strides = [1, 1]} : vector<22x44xf32> to vector<16x44xf32>
    %c6_83 = arith.constant 6 : index
    %c0_84 = arith.constant 0 : index
    %108 = vector.load %arg1[%c6_83, %c0_84] : memref<49x44xf32, #tpu.memory_space<vmem>>, vector<1x44xf32>
    %109 = vector.broadcast %108 : vector<1x44xf32> to vector<16x44xf32>
    %110 = arith.mulf %107, %109 : vector<16x44xf32>
    %111 = arith.addf %106, %110 : vector<16x44xf32>
    %112 = vector.extract_strided_slice %69 {offsets = [1, 0], sizes = [16, 44], strides = [1, 1]} : vector<22x44xf32> to vector<16x44xf32>
    %c7 = arith.constant 7 : index
    %c0_85 = arith.constant 0 : index
    %113 = vector.load %arg1[%c7, %c0_85] : memref<49x44xf32, #tpu.memory_space<vmem>>, vector<1x44xf32>
    %114 = vector.broadcast %113 : vector<1x44xf32> to vector<16x44xf32>
    %115 = arith.mulf %112, %114 : vector<16x44xf32>
    %116 = arith.addf %111, %115 : vector<16x44xf32>
    %117 = vector.extract_strided_slice %70 {offsets = [1, 0], sizes = [16, 44], strides = [1, 1]} : vector<22x44xf32> to vector<16x44xf32>
    %c8 = arith.constant 8 : index
    %c0_86 = arith.constant 0 : index
    %118 = vector.load %arg1[%c8, %c0_86] : memref<49x44xf32, #tpu.memory_space<vmem>>, vector<1x44xf32>
    %119 = vector.broadcast %118 : vector<1x44xf32> to vector<16x44xf32>
    %120 = arith.mulf %117, %119 : vector<16x44xf32>
    %121 = arith.addf %116, %120 : vector<16x44xf32>
    %122 = vector.extract_strided_slice %71 {offsets = [1, 0], sizes = [16, 44], strides = [1, 1]} : vector<22x44xf32> to vector<16x44xf32>
    %c9 = arith.constant 9 : index
    %c0_87 = arith.constant 0 : index
    %123 = vector.load %arg1[%c9, %c0_87] : memref<49x44xf32, #tpu.memory_space<vmem>>, vector<1x44xf32>
    %124 = vector.broadcast %123 : vector<1x44xf32> to vector<16x44xf32>
    %125 = arith.mulf %122, %124 : vector<16x44xf32>
    %126 = arith.addf %121, %125 : vector<16x44xf32>
    %127 = vector.extract_strided_slice %72 {offsets = [1, 0], sizes = [16, 44], strides = [1, 1]} : vector<22x44xf32> to vector<16x44xf32>
    %c10 = arith.constant 10 : index
    %c0_88 = arith.constant 0 : index
    %128 = vector.load %arg1[%c10, %c0_88] : memref<49x44xf32, #tpu.memory_space<vmem>>, vector<1x44xf32>
    %129 = vector.broadcast %128 : vector<1x44xf32> to vector<16x44xf32>
    %130 = arith.mulf %127, %129 : vector<16x44xf32>
    %131 = arith.addf %126, %130 : vector<16x44xf32>
    %132 = vector.extract_strided_slice %73 {offsets = [1, 0], sizes = [16, 44], strides = [1, 1]} : vector<22x44xf32> to vector<16x44xf32>
    %c11 = arith.constant 11 : index
    %c0_89 = arith.constant 0 : index
    %133 = vector.load %arg1[%c11, %c0_89] : memref<49x44xf32, #tpu.memory_space<vmem>>, vector<1x44xf32>
    %134 = vector.broadcast %133 : vector<1x44xf32> to vector<16x44xf32>
    %135 = arith.mulf %132, %134 : vector<16x44xf32>
    %136 = arith.addf %131, %135 : vector<16x44xf32>
    %137 = vector.extract_strided_slice %74 {offsets = [1, 0], sizes = [16, 44], strides = [1, 1]} : vector<22x44xf32> to vector<16x44xf32>
    %c12 = arith.constant 12 : index
    %c0_90 = arith.constant 0 : index
    %138 = vector.load %arg1[%c12, %c0_90] : memref<49x44xf32, #tpu.memory_space<vmem>>, vector<1x44xf32>
    %139 = vector.broadcast %138 : vector<1x44xf32> to vector<16x44xf32>
    %140 = arith.mulf %137, %139 : vector<16x44xf32>
    %141 = arith.addf %136, %140 : vector<16x44xf32>
    %142 = vector.extract_strided_slice %75 {offsets = [1, 0], sizes = [16, 44], strides = [1, 1]} : vector<22x44xf32> to vector<16x44xf32>
    %c13 = arith.constant 13 : index
    %c0_91 = arith.constant 0 : index
    %143 = vector.load %arg1[%c13, %c0_91] : memref<49x44xf32, #tpu.memory_space<vmem>>, vector<1x44xf32>
    %144 = vector.broadcast %143 : vector<1x44xf32> to vector<16x44xf32>
    %145 = arith.mulf %142, %144 : vector<16x44xf32>
    %146 = arith.addf %141, %145 : vector<16x44xf32>
    %147 = vector.extract_strided_slice %69 {offsets = [2, 0], sizes = [16, 44], strides = [1, 1]} : vector<22x44xf32> to vector<16x44xf32>
    %c14 = arith.constant 14 : index
    %c0_92 = arith.constant 0 : index
    %148 = vector.load %arg1[%c14, %c0_92] : memref<49x44xf32, #tpu.memory_space<vmem>>, vector<1x44xf32>
    %149 = vector.broadcast %148 : vector<1x44xf32> to vector<16x44xf32>
    %150 = arith.mulf %147, %149 : vector<16x44xf32>
    %151 = arith.addf %146, %150 : vector<16x44xf32>
    %152 = vector.extract_strided_slice %70 {offsets = [2, 0], sizes = [16, 44], strides = [1, 1]} : vector<22x44xf32> to vector<16x44xf32>
    %c15_93 = arith.constant 15 : index
    %c0_94 = arith.constant 0 : index
    %153 = vector.load %arg1[%c15_93, %c0_94] : memref<49x44xf32, #tpu.memory_space<vmem>>, vector<1x44xf32>
    %154 = vector.broadcast %153 : vector<1x44xf32> to vector<16x44xf32>
    %155 = arith.mulf %152, %154 : vector<16x44xf32>
    %156 = arith.addf %151, %155 : vector<16x44xf32>
    %157 = vector.extract_strided_slice %71 {offsets = [2, 0], sizes = [16, 44], strides = [1, 1]} : vector<22x44xf32> to vector<16x44xf32>
    %c16_95 = arith.constant 16 : index
    %c0_96 = arith.constant 0 : index
    %158 = vector.load %arg1[%c16_95, %c0_96] : memref<49x44xf32, #tpu.memory_space<vmem>>, vector<1x44xf32>
    %159 = vector.broadcast %158 : vector<1x44xf32> to vector<16x44xf32>
    %160 = arith.mulf %157, %159 : vector<16x44xf32>
    %161 = arith.addf %156, %160 : vector<16x44xf32>
    %162 = vector.extract_strided_slice %72 {offsets = [2, 0], sizes = [16, 44], strides = [1, 1]} : vector<22x44xf32> to vector<16x44xf32>
    %c17_97 = arith.constant 17 : index
    %c0_98 = arith.constant 0 : index
    %163 = vector.load %arg1[%c17_97, %c0_98] : memref<49x44xf32, #tpu.memory_space<vmem>>, vector<1x44xf32>
    %164 = vector.broadcast %163 : vector<1x44xf32> to vector<16x44xf32>
    %165 = arith.mulf %162, %164 : vector<16x44xf32>
    %166 = arith.addf %161, %165 : vector<16x44xf32>
    %167 = vector.extract_strided_slice %73 {offsets = [2, 0], sizes = [16, 44], strides = [1, 1]} : vector<22x44xf32> to vector<16x44xf32>
    %c18 = arith.constant 18 : index
    %c0_99 = arith.constant 0 : index
    %168 = vector.load %arg1[%c18, %c0_99] : memref<49x44xf32, #tpu.memory_space<vmem>>, vector<1x44xf32>
    %169 = vector.broadcast %168 : vector<1x44xf32> to vector<16x44xf32>
    %170 = arith.mulf %167, %169 : vector<16x44xf32>
    %171 = arith.addf %166, %170 : vector<16x44xf32>
    %172 = vector.extract_strided_slice %74 {offsets = [2, 0], sizes = [16, 44], strides = [1, 1]} : vector<22x44xf32> to vector<16x44xf32>
    %c19_100 = arith.constant 19 : index
    %c0_101 = arith.constant 0 : index
    %173 = vector.load %arg1[%c19_100, %c0_101] : memref<49x44xf32, #tpu.memory_space<vmem>>, vector<1x44xf32>
    %174 = vector.broadcast %173 : vector<1x44xf32> to vector<16x44xf32>
    %175 = arith.mulf %172, %174 : vector<16x44xf32>
    %176 = arith.addf %171, %175 : vector<16x44xf32>
    %177 = vector.extract_strided_slice %75 {offsets = [2, 0], sizes = [16, 44], strides = [1, 1]} : vector<22x44xf32> to vector<16x44xf32>
    %c20_102 = arith.constant 20 : index
    %c0_103 = arith.constant 0 : index
    %178 = vector.load %arg1[%c20_102, %c0_103] : memref<49x44xf32, #tpu.memory_space<vmem>>, vector<1x44xf32>
    %179 = vector.broadcast %178 : vector<1x44xf32> to vector<16x44xf32>
    %180 = arith.mulf %177, %179 : vector<16x44xf32>
    %181 = arith.addf %176, %180 : vector<16x44xf32>
    %182 = vector.extract_strided_slice %69 {offsets = [3, 0], sizes = [16, 44], strides = [1, 1]} : vector<22x44xf32> to vector<16x44xf32>
    %c21_104 = arith.constant 21 : index
    %c0_105 = arith.constant 0 : index
    %183 = vector.load %arg1[%c21_104, %c0_105] : memref<49x44xf32, #tpu.memory_space<vmem>>, vector<1x44xf32>
    %184 = vector.broadcast %183 : vector<1x44xf32> to vector<16x44xf32>
    %185 = arith.mulf %182, %184 : vector<16x44xf32>
    %186 = arith.addf %181, %185 : vector<16x44xf32>
    %187 = vector.extract_strided_slice %70 {offsets = [3, 0], sizes = [16, 44], strides = [1, 1]} : vector<22x44xf32> to vector<16x44xf32>
    %c22_106 = arith.constant 22 : index
    %c0_107 = arith.constant 0 : index
    %188 = vector.load %arg1[%c22_106, %c0_107] : memref<49x44xf32, #tpu.memory_space<vmem>>, vector<1x44xf32>
    %189 = vector.broadcast %188 : vector<1x44xf32> to vector<16x44xf32>
    %190 = arith.mulf %187, %189 : vector<16x44xf32>
    %191 = arith.addf %186, %190 : vector<16x44xf32>
    %192 = vector.extract_strided_slice %71 {offsets = [3, 0], sizes = [16, 44], strides = [1, 1]} : vector<22x44xf32> to vector<16x44xf32>
    %c23_108 = arith.constant 23 : index
    %c0_109 = arith.constant 0 : index
    %193 = vector.load %arg1[%c23_108, %c0_109] : memref<49x44xf32, #tpu.memory_space<vmem>>, vector<1x44xf32>
    %194 = vector.broadcast %193 : vector<1x44xf32> to vector<16x44xf32>
    %195 = arith.mulf %192, %194 : vector<16x44xf32>
    %196 = arith.addf %191, %195 : vector<16x44xf32>
    %197 = vector.extract_strided_slice %72 {offsets = [3, 0], sizes = [16, 44], strides = [1, 1]} : vector<22x44xf32> to vector<16x44xf32>
    %c24_110 = arith.constant 24 : index
    %c0_111 = arith.constant 0 : index
    %198 = vector.load %arg1[%c24_110, %c0_111] : memref<49x44xf32, #tpu.memory_space<vmem>>, vector<1x44xf32>
    %199 = vector.broadcast %198 : vector<1x44xf32> to vector<16x44xf32>
    %200 = arith.mulf %197, %199 : vector<16x44xf32>
    %201 = arith.addf %196, %200 : vector<16x44xf32>
    %202 = vector.extract_strided_slice %73 {offsets = [3, 0], sizes = [16, 44], strides = [1, 1]} : vector<22x44xf32> to vector<16x44xf32>
    %c25_112 = arith.constant 25 : index
    %c0_113 = arith.constant 0 : index
    %203 = vector.load %arg1[%c25_112, %c0_113] : memref<49x44xf32, #tpu.memory_space<vmem>>, vector<1x44xf32>
    %204 = vector.broadcast %203 : vector<1x44xf32> to vector<16x44xf32>
    %205 = arith.mulf %202, %204 : vector<16x44xf32>
    %206 = arith.addf %201, %205 : vector<16x44xf32>
    %207 = vector.extract_strided_slice %74 {offsets = [3, 0], sizes = [16, 44], strides = [1, 1]} : vector<22x44xf32> to vector<16x44xf32>
    %c26_114 = arith.constant 26 : index
    %c0_115 = arith.constant 0 : index
    %208 = vector.load %arg1[%c26_114, %c0_115] : memref<49x44xf32, #tpu.memory_space<vmem>>, vector<1x44xf32>
    %209 = vector.broadcast %208 : vector<1x44xf32> to vector<16x44xf32>
    %210 = arith.mulf %207, %209 : vector<16x44xf32>
    %211 = arith.addf %206, %210 : vector<16x44xf32>
    %212 = vector.extract_strided_slice %75 {offsets = [3, 0], sizes = [16, 44], strides = [1, 1]} : vector<22x44xf32> to vector<16x44xf32>
    %c27_116 = arith.constant 27 : index
    %c0_117 = arith.constant 0 : index
    %213 = vector.load %arg1[%c27_116, %c0_117] : memref<49x44xf32, #tpu.memory_space<vmem>>, vector<1x44xf32>
    %214 = vector.broadcast %213 : vector<1x44xf32> to vector<16x44xf32>
    %215 = arith.mulf %212, %214 : vector<16x44xf32>
    %216 = arith.addf %211, %215 : vector<16x44xf32>
    %217 = vector.extract_strided_slice %69 {offsets = [4, 0], sizes = [16, 44], strides = [1, 1]} : vector<22x44xf32> to vector<16x44xf32>
    %c28_118 = arith.constant 28 : index
    %c0_119 = arith.constant 0 : index
    %218 = vector.load %arg1[%c28_118, %c0_119] : memref<49x44xf32, #tpu.memory_space<vmem>>, vector<1x44xf32>
    %219 = vector.broadcast %218 : vector<1x44xf32> to vector<16x44xf32>
    %220 = arith.mulf %217, %219 : vector<16x44xf32>
    %221 = arith.addf %216, %220 : vector<16x44xf32>
    %222 = vector.extract_strided_slice %70 {offsets = [4, 0], sizes = [16, 44], strides = [1, 1]} : vector<22x44xf32> to vector<16x44xf32>
    %c29 = arith.constant 29 : index
    %c0_120 = arith.constant 0 : index
    %223 = vector.load %arg1[%c29, %c0_120] : memref<49x44xf32, #tpu.memory_space<vmem>>, vector<1x44xf32>
    %224 = vector.broadcast %223 : vector<1x44xf32> to vector<16x44xf32>
    %225 = arith.mulf %222, %224 : vector<16x44xf32>
    %226 = arith.addf %221, %225 : vector<16x44xf32>
    %227 = vector.extract_strided_slice %71 {offsets = [4, 0], sizes = [16, 44], strides = [1, 1]} : vector<22x44xf32> to vector<16x44xf32>
    %c30 = arith.constant 30 : index
    %c0_121 = arith.constant 0 : index
    %228 = vector.load %arg1[%c30, %c0_121] : memref<49x44xf32, #tpu.memory_space<vmem>>, vector<1x44xf32>
    %229 = vector.broadcast %228 : vector<1x44xf32> to vector<16x44xf32>
    %230 = arith.mulf %227, %229 : vector<16x44xf32>
    %231 = arith.addf %226, %230 : vector<16x44xf32>
    %232 = vector.extract_strided_slice %72 {offsets = [4, 0], sizes = [16, 44], strides = [1, 1]} : vector<22x44xf32> to vector<16x44xf32>
    %c31 = arith.constant 31 : index
    %c0_122 = arith.constant 0 : index
    %233 = vector.load %arg1[%c31, %c0_122] : memref<49x44xf32, #tpu.memory_space<vmem>>, vector<1x44xf32>
    %234 = vector.broadcast %233 : vector<1x44xf32> to vector<16x44xf32>
    %235 = arith.mulf %232, %234 : vector<16x44xf32>
    %236 = arith.addf %231, %235 : vector<16x44xf32>
    %237 = vector.extract_strided_slice %73 {offsets = [4, 0], sizes = [16, 44], strides = [1, 1]} : vector<22x44xf32> to vector<16x44xf32>
    %c32 = arith.constant 32 : index
    %c0_123 = arith.constant 0 : index
    %238 = vector.load %arg1[%c32, %c0_123] : memref<49x44xf32, #tpu.memory_space<vmem>>, vector<1x44xf32>
    %239 = vector.broadcast %238 : vector<1x44xf32> to vector<16x44xf32>
    %240 = arith.mulf %237, %239 : vector<16x44xf32>
    %241 = arith.addf %236, %240 : vector<16x44xf32>
    %242 = vector.extract_strided_slice %74 {offsets = [4, 0], sizes = [16, 44], strides = [1, 1]} : vector<22x44xf32> to vector<16x44xf32>
    %c33 = arith.constant 33 : index
    %c0_124 = arith.constant 0 : index
    %243 = vector.load %arg1[%c33, %c0_124] : memref<49x44xf32, #tpu.memory_space<vmem>>, vector<1x44xf32>
    %244 = vector.broadcast %243 : vector<1x44xf32> to vector<16x44xf32>
    %245 = arith.mulf %242, %244 : vector<16x44xf32>
    %246 = arith.addf %241, %245 : vector<16x44xf32>
    %247 = vector.extract_strided_slice %75 {offsets = [4, 0], sizes = [16, 44], strides = [1, 1]} : vector<22x44xf32> to vector<16x44xf32>
    %c34 = arith.constant 34 : index
    %c0_125 = arith.constant 0 : index
    %248 = vector.load %arg1[%c34, %c0_125] : memref<49x44xf32, #tpu.memory_space<vmem>>, vector<1x44xf32>
    %249 = vector.broadcast %248 : vector<1x44xf32> to vector<16x44xf32>
    %250 = arith.mulf %247, %249 : vector<16x44xf32>
    %251 = arith.addf %246, %250 : vector<16x44xf32>
    %252 = vector.extract_strided_slice %69 {offsets = [5, 0], sizes = [16, 44], strides = [1, 1]} : vector<22x44xf32> to vector<16x44xf32>
    %c35 = arith.constant 35 : index
    %c0_126 = arith.constant 0 : index
    %253 = vector.load %arg1[%c35, %c0_126] : memref<49x44xf32, #tpu.memory_space<vmem>>, vector<1x44xf32>
    %254 = vector.broadcast %253 : vector<1x44xf32> to vector<16x44xf32>
    %255 = arith.mulf %252, %254 : vector<16x44xf32>
    %256 = arith.addf %251, %255 : vector<16x44xf32>
    %257 = vector.extract_strided_slice %70 {offsets = [5, 0], sizes = [16, 44], strides = [1, 1]} : vector<22x44xf32> to vector<16x44xf32>
    %c36 = arith.constant 36 : index
    %c0_127 = arith.constant 0 : index
    %258 = vector.load %arg1[%c36, %c0_127] : memref<49x44xf32, #tpu.memory_space<vmem>>, vector<1x44xf32>
    %259 = vector.broadcast %258 : vector<1x44xf32> to vector<16x44xf32>
    %260 = arith.mulf %257, %259 : vector<16x44xf32>
    %261 = arith.addf %256, %260 : vector<16x44xf32>
    %262 = vector.extract_strided_slice %71 {offsets = [5, 0], sizes = [16, 44], strides = [1, 1]} : vector<22x44xf32> to vector<16x44xf32>
    %c37_128 = arith.constant 37 : index
    %c0_129 = arith.constant 0 : index
    %263 = vector.load %arg1[%c37_128, %c0_129] : memref<49x44xf32, #tpu.memory_space<vmem>>, vector<1x44xf32>
    %264 = vector.broadcast %263 : vector<1x44xf32> to vector<16x44xf32>
    %265 = arith.mulf %262, %264 : vector<16x44xf32>
    %266 = arith.addf %261, %265 : vector<16x44xf32>
    %267 = vector.extract_strided_slice %72 {offsets = [5, 0], sizes = [16, 44], strides = [1, 1]} : vector<22x44xf32> to vector<16x44xf32>
    %c38_130 = arith.constant 38 : index
    %c0_131 = arith.constant 0 : index
    %268 = vector.load %arg1[%c38_130, %c0_131] : memref<49x44xf32, #tpu.memory_space<vmem>>, vector<1x44xf32>
    %269 = vector.broadcast %268 : vector<1x44xf32> to vector<16x44xf32>
    %270 = arith.mulf %267, %269 : vector<16x44xf32>
    %271 = arith.addf %266, %270 : vector<16x44xf32>
    %272 = vector.extract_strided_slice %73 {offsets = [5, 0], sizes = [16, 44], strides = [1, 1]} : vector<22x44xf32> to vector<16x44xf32>
    %c39_132 = arith.constant 39 : index
    %c0_133 = arith.constant 0 : index
    %273 = vector.load %arg1[%c39_132, %c0_133] : memref<49x44xf32, #tpu.memory_space<vmem>>, vector<1x44xf32>
    %274 = vector.broadcast %273 : vector<1x44xf32> to vector<16x44xf32>
    %275 = arith.mulf %272, %274 : vector<16x44xf32>
    %276 = arith.addf %271, %275 : vector<16x44xf32>
    %277 = vector.extract_strided_slice %74 {offsets = [5, 0], sizes = [16, 44], strides = [1, 1]} : vector<22x44xf32> to vector<16x44xf32>
    %c40 = arith.constant 40 : index
    %c0_134 = arith.constant 0 : index
    %278 = vector.load %arg1[%c40, %c0_134] : memref<49x44xf32, #tpu.memory_space<vmem>>, vector<1x44xf32>
    %279 = vector.broadcast %278 : vector<1x44xf32> to vector<16x44xf32>
    %280 = arith.mulf %277, %279 : vector<16x44xf32>
    %281 = arith.addf %276, %280 : vector<16x44xf32>
    %282 = vector.extract_strided_slice %75 {offsets = [5, 0], sizes = [16, 44], strides = [1, 1]} : vector<22x44xf32> to vector<16x44xf32>
    %c41_135 = arith.constant 41 : index
    %c0_136 = arith.constant 0 : index
    %283 = vector.load %arg1[%c41_135, %c0_136] : memref<49x44xf32, #tpu.memory_space<vmem>>, vector<1x44xf32>
    %284 = vector.broadcast %283 : vector<1x44xf32> to vector<16x44xf32>
    %285 = arith.mulf %282, %284 : vector<16x44xf32>
    %286 = arith.addf %281, %285 : vector<16x44xf32>
    %287 = vector.extract_strided_slice %69 {offsets = [6, 0], sizes = [16, 44], strides = [1, 1]} : vector<22x44xf32> to vector<16x44xf32>
    %c42_137 = arith.constant 42 : index
    %c0_138 = arith.constant 0 : index
    %288 = vector.load %arg1[%c42_137, %c0_138] : memref<49x44xf32, #tpu.memory_space<vmem>>, vector<1x44xf32>
    %289 = vector.broadcast %288 : vector<1x44xf32> to vector<16x44xf32>
    %290 = arith.mulf %287, %289 : vector<16x44xf32>
    %291 = arith.addf %286, %290 : vector<16x44xf32>
    %292 = vector.extract_strided_slice %70 {offsets = [6, 0], sizes = [16, 44], strides = [1, 1]} : vector<22x44xf32> to vector<16x44xf32>
    %c43_139 = arith.constant 43 : index
    %c0_140 = arith.constant 0 : index
    %293 = vector.load %arg1[%c43_139, %c0_140] : memref<49x44xf32, #tpu.memory_space<vmem>>, vector<1x44xf32>
    %294 = vector.broadcast %293 : vector<1x44xf32> to vector<16x44xf32>
    %295 = arith.mulf %292, %294 : vector<16x44xf32>
    %296 = arith.addf %291, %295 : vector<16x44xf32>
    %297 = vector.extract_strided_slice %71 {offsets = [6, 0], sizes = [16, 44], strides = [1, 1]} : vector<22x44xf32> to vector<16x44xf32>
    %c44_141 = arith.constant 44 : index
    %c0_142 = arith.constant 0 : index
    %298 = vector.load %arg1[%c44_141, %c0_142] : memref<49x44xf32, #tpu.memory_space<vmem>>, vector<1x44xf32>
    %299 = vector.broadcast %298 : vector<1x44xf32> to vector<16x44xf32>
    %300 = arith.mulf %297, %299 : vector<16x44xf32>
    %301 = arith.addf %296, %300 : vector<16x44xf32>
    %302 = vector.extract_strided_slice %72 {offsets = [6, 0], sizes = [16, 44], strides = [1, 1]} : vector<22x44xf32> to vector<16x44xf32>
    %c45 = arith.constant 45 : index
    %c0_143 = arith.constant 0 : index
    %303 = vector.load %arg1[%c45, %c0_143] : memref<49x44xf32, #tpu.memory_space<vmem>>, vector<1x44xf32>
    %304 = vector.broadcast %303 : vector<1x44xf32> to vector<16x44xf32>
    %305 = arith.mulf %302, %304 : vector<16x44xf32>
    %306 = arith.addf %301, %305 : vector<16x44xf32>
    %307 = vector.extract_strided_slice %73 {offsets = [6, 0], sizes = [16, 44], strides = [1, 1]} : vector<22x44xf32> to vector<16x44xf32>
    %c46 = arith.constant 46 : index
    %c0_144 = arith.constant 0 : index
    %308 = vector.load %arg1[%c46, %c0_144] : memref<49x44xf32, #tpu.memory_space<vmem>>, vector<1x44xf32>
    %309 = vector.broadcast %308 : vector<1x44xf32> to vector<16x44xf32>
    %310 = arith.mulf %307, %309 : vector<16x44xf32>
    %311 = arith.addf %306, %310 : vector<16x44xf32>
    %312 = vector.extract_strided_slice %74 {offsets = [6, 0], sizes = [16, 44], strides = [1, 1]} : vector<22x44xf32> to vector<16x44xf32>
    %c47 = arith.constant 47 : index
    %c0_145 = arith.constant 0 : index
    %313 = vector.load %arg1[%c47, %c0_145] : memref<49x44xf32, #tpu.memory_space<vmem>>, vector<1x44xf32>
    %314 = vector.broadcast %313 : vector<1x44xf32> to vector<16x44xf32>
    %315 = arith.mulf %312, %314 : vector<16x44xf32>
    %316 = arith.addf %311, %315 : vector<16x44xf32>
    %317 = vector.extract_strided_slice %75 {offsets = [6, 0], sizes = [16, 44], strides = [1, 1]} : vector<22x44xf32> to vector<16x44xf32>
    %c48 = arith.constant 48 : index
    %c0_146 = arith.constant 0 : index
    %318 = vector.load %arg1[%c48, %c0_146] : memref<49x44xf32, #tpu.memory_space<vmem>>, vector<1x44xf32>
    %319 = vector.broadcast %318 : vector<1x44xf32> to vector<16x44xf32>
    %320 = arith.mulf %317, %319 : vector<16x44xf32>
    %321 = arith.addf %316, %320 : vector<16x44xf32>
    %322 = vector.extract_strided_slice %321 {offsets = [0, 0], sizes = [16, 22], strides = [1, 1]} : vector<16x44xf32> to vector<16x22xf32>
    %323 = vector.extract_strided_slice %321 {offsets = [0, 22], sizes = [16, 22], strides = [1, 1]} : vector<16x44xf32> to vector<16x22xf32>
    %324 = arith.addf %322, %323 : vector<16x22xf32>
    %c0_147 = arith.constant 0 : index
    %325 = memref.load %arg2[%c0_147] : memref<1xf32, #tpu.memory_space<smem>>
    %326 = vector.broadcast %325 : f32 to vector<16x22xf32>
    %327 = arith.addf %324, %326 : vector<16x22xf32>
    %328 = vector.extract_strided_slice %327 {offsets = [0, 0], sizes = [16, 16], strides = [1, 1]} : vector<16x22xf32> to vector<16x16xf32>
    %c0_148 = arith.constant 0 : index
    %c0_149 = arith.constant 0 : index
    %c0_150 = arith.constant 0 : index
    %c0_151 = arith.constant 0 : index
    %329 = vector.load %arg4[%c0_148, %c0_149, %c0_150, %c0_151] : memref<1x1x16x16xf32, #tpu.memory_space<vmem>>, vector<1x1x16x16xf32>
    %330 = vector.shape_cast %329 : vector<1x1x16x16xf32> to vector<16x16xf32>
    %331 = vector.shape_cast %328 : vector<16x16xf32> to vector<1x1x16x16xf32>
    tpu.vector_store %arg4[%c0_148, %c0_149, %c0_150, %c0_151], %331 {strides = array<i32>} : memref<1x1x16x16xf32, #tpu.memory_space<vmem>>, vector<1x1x16x16xf32>,
    return
  }
  func.func @transform_0(%arg0: i32) -> (i32, i32) {
    %c0_i32 = arith.constant 0 : i32
    %c0_i32_0 = arith.constant 0 : i32
    %c0_i32_1 = arith.constant 0 : i32
    return %c0_i32, %c0_i32_0 : i32, i32
  }
  func.func @transform_1(%arg0: i32) -> i32 {
    %c0_i32 = arith.constant 0 : i32
    %c0_i32_0 = arith.constant 0 : i32
    return %c0_i32 : i32
  }
  func.func @transform_2(%arg0: i32) -> (i32, i32, i32, i32) {
    %c0_i32 = arith.constant 0 : i32
    %c0_i32_0 = arith.constant 0 : i32
    %c0_i32_1 = arith.constant 0 : i32
    %c0_i32_2 = arith.constant 0 : i32
    return %arg0, %c0_i32, %c0_i32_0, %c0_i32_1 : i32, i32, i32, i32
  }
  func.func @transform_3(%arg0: i32) -> (i32, i32, i32, i32) {
    %c0_i32 = arith.constant 0 : i32
    %c0_i32_0 = arith.constant 0 : i32
    %c0_i32_1 = arith.constant 0 : i32
    %c0_i32_2 = arith.constant 0 : i32
    return %arg0, %c0_i32, %c0_i32_0, %c0_i32_1 : i32, i32, i32, i32
  }
}

</mosaic_0001>

<llo_original>
// kernel: tpu_custom_call.1
$region0: #{tpu_custom_call.1}
  #allocation0 [shape = 'u32[]', space=smem, size = 0x4, offset = 0x4, fixed_abs, tag = 'smem constant byte address 0x4 - core index']
  #allocation1 [shape = 'u32[144,128]{1,0:T(1,128)}', space=vmem, size = 0x12000, scoped, tag = 'internal scratch']
  #allocation2 [shape = 'f32[22,50]{1,0:T(8,128)}', space=vmem, size = 0x3000, scoped, tag = 'scratch operand']
  #allocation3 [shape = 'f32[1]{0:T(128)S(6)}', space=smem, size = 0x200, scoped, tag = 'scoped memory for tpu_custom_call.1']
  %s0 = inlined_call_operand.vmem [shape: f32[49,44], index: 0, kind: input, shape index: {}]
  %s1 = inlined_call_operand.<no memory space> [shape: f32[1], index: 1, kind: input, shape index: {}]
  %s2 = inlined_call_operand.hbm [shape: f32[2,4,16,16], index: 2, kind: input, shape index: {}]
  %s3 = inlined_call_operand.hbm [shape: f32[2,1,16,16], index: 3, kind: output, shape index: {}]
  %s4 = sld [smem:[#allocation0]]
  $region49: #{tpu_custom_call.1} parent=0
    _
  %s6 = ssub.s32 1, %s4
  %s7 = scalar_select 0, %s6, %s4
  %8 = sst [smem:[#allocation3]] %s1
  $region1: #{tpu_custom_call.1} parent=0
    #allocation4 [shape = 'u8[65536]{0}', space=vmem, size = 0x10000, scoped, tag = 'input window, operand 2']
    #allocation5 [shape = 's32[2]{0}', space=sflag, size = 0x8, scoped, tag = 'scoped memory for tpu_custom_call.1']
    #allocation6 [shape = 's32[2]{0}', space=sflag, size = 0x8, scoped, tag = 'scoped memory for tpu_custom_call.1']
    #allocation7 [shape = 'u8[16384]{0}', space=vmem, size = 0x4000, scoped, tag = 'output window, operand 0']
    %9 = vsyncpa [#allocation5], 0
    %s10 = scalar_lea.sflag [#allocation5], 1
    %11 = vsyncpa %s10, 0
    %12 = vsyncpa [#allocation6], 0
    %s13 = scalar_lea.sflag [#allocation6], 1
    %14 = vsyncpa %s13, 0
    loop: start=0, step=1, limit=4
    $region2: #{tpu_custom_call.1} parent=1 // loop_pre_header
      _
    $region3: #{tpu_custom_call.1} parent=1 // loop_header
      %s16 = sphi 0, %s20
      %p17 = scmp.ge.s32.totalorder %s16, 4
      %s24 = sphi 0, %s24
      %s26 = sphi 0, %s24
      %s27 = sphi 0, %s26
      %s41 = sphi 0, %s27
      %s45 = sphi 0, %s45
      %s47 = sphi 0, %s45
      %s48 = sphi 0, %s47
      %s62 = sphi 0, %s48
      %s68 = sphi 0, %s70
      %s71 = sphi 0, %s68
      %s72 = sphi 0, %s71
      %s88 = sphi 0, %s72
      %s94 = sphi 0, %s96
      %s97 = sphi 0, %s94
      %s98 = sphi 0, %s97
      %s114 = sphi 0, %s98
    $region4: #{tpu_custom_call.1} parent=1 // loop_header_branch
      %19 = sbr.rel (%p17) target = $region8
    $region5: #{tpu_custom_call.1} parent=1 // loop_body
      %s21 = ssub.s32 %s16, 1
      %s22 = ssub.s32 %s16, 2
      %s23 = sadd.s32 %s16, 1
      %s25 = sadd.s32 %s24, 1
      %p28 = scmp.eq.s32.totalorder %s16, 1
      %p29 = scmp.ne.s32.totalorder %s24, %s26
      %p30 = scmp.eq.s32.totalorder %s16, 0
      %p31 = por %p29, %p30
      %p32 = scmp.ne.s32.totalorder %s24, %s26
      %p33 = scmp.eq.s32.totalorder %s21, 1
      %p34 = por %p32, %p33
      %p35 = scmp.ne.s32.totalorder %s26, %s27
      %p36 = scmp.eq.s32.totalorder %s21, 0
      %p37 = por %p35, %p36
      %p38 = scmp.ne.s32.totalorder %s26, %s27
      %p39 = scmp.eq.s32.totalorder %s22, 1
      %p40 = por %p38, %p39
      %p42 = scmp.ne.s32.totalorder %s27, %s41
      %p43 = scmp.eq.s32.totalorder %s22, 0
      %p44 = por %p42, %p43
      %s46 = sadd.s32 %s45, 1
      %p49 = scmp.eq.s32.totalorder %s16, 1
      %p50 = scmp.ne.s32.totalorder %s45, %s47
      %p51 = scmp.eq.s32.totalorder %s16, 0
      %p52 = por %p50, %p51
      %p53 = scmp.ne.s32.totalorder %s45, %s47
      %p54 = scmp.eq.s32.totalorder %s21, 1
      %p55 = por %p53, %p54
      %p56 = scmp.ne.s32.totalorder %s47, %s48
      %p57 = scmp.eq.s32.totalorder %s21, 0
      %p58 = por %p56, %p57
      %p59 = scmp.ne.s32.totalorder %s47, %s48
      %p60 = scmp.eq.s32.totalorder %s22, 1
      %p61 = por %p59, %p60
      %p63 = scmp.ne.s32.totalorder %s48, %s62
      %p64 = scmp.eq.s32.totalorder %s22, 0
      %p65 = por %p63, %p64
      %s66 = ssub.s32 %s16, %s23
      %p67 = scmp.eq.s32.totalorder %s66, 0
      %s69 = sadd.s32 %s68, 1
      %s70 = scalar_select %p67, %s68, %s69
      %p73 = pneg %p67
      %p74 = scmp.eq.s32.totalorder %s16, 1
      %p75 = por %p73, %p74
      %p76 = scmp.ne.s32.totalorder %s68, %s71
      %p77 = scmp.eq.s32.totalorder %s16, 0
      %p78 = por %p76, %p77
      %p79 = scmp.ne.s32.totalorder %s68, %s71
      %p80 = scmp.eq.s32.totalorder %s21, 1
      %p81 = por %p79, %p80
      %p82 = scmp.ne.s32.totalorder %s71, %s72
      %p83 = scmp.eq.s32.totalorder %s21, 0
      %p84 = por %p82, %p83
      %p85 = scmp.ne.s32.totalorder %s71, %s72
      %p86 = scmp.eq.s32.totalorder %s22, 1
      %p87 = por %p85, %p86
      %p89 = scmp.ne.s32.totalorder %s72, %s88
      %p90 = scmp.eq.s32.totalorder %s22, 0
      %p91 = por %p89, %p90
      %s92 = ssub.s32 %s16, %s23
      %p93 = scmp.eq.s32.totalorder %s92, 0
      %s95 = sadd.s32 %s94, 1
      %s96 = scalar_select %p93, %s94, %s95
      %p99 = pneg %p93
      %p100 = scmp.eq.s32.totalorder %s16, 1
      %p101 = por %p99, %p100
      %p102 = scmp.ne.s32.totalorder %s94, %s97
      %p103 = scmp.eq.s32.totalorder %s16, 0
      %p104 = por %p102, %p103
      %p105 = scmp.ne.s32.totalorder %s94, %s97
      %p106 = scmp.eq.s32.totalorder %s21, 1
      %p107 = por %p105, %p106
      %p108 = scmp.ne.s32.totalorder %s97, %s98
      %p109 = scmp.eq.s32.totalorder %s21, 0
      %p110 = por %p108, %p109
      %p111 = scmp.ne.s32.totalorder %s97, %s98
      %p112 = scmp.eq.s32.totalorder %s22, 1
      %p113 = por %p111, %p112
      %p115 = scmp.ne.s32.totalorder %s98, %s114
      %p116 = scmp.eq.s32.totalorder %s22, 0
      %p117 = por %p115, %p116
      %p118 = scmp.le.s32.totalorder 1, %s16
      %p119 = scmp.lt.s32.totalorder %s16, 3
      %p120 = pnand %p118, %p119
      %p121 = pneg %p120
      // Predicated region
      $region9: #{tpu_custom_call.1} parent=5 // pred_check
        _
      $region10: #{tpu_custom_call.1} parent=5 // pred_check_branch
        %123 = sbr.rel (%p120) target = $region12
      $region11: #{tpu_custom_call.1} parent=5 // pred_region
        %s124 = ssub.s32 %s16, 1
        // Predicated region
        $region13: #{tpu_custom_call.1} parent=11 // pred_check
          %p125 = pneg %p37
        $region14: #{tpu_custom_call.1} parent=11 // pred_check_branch
          %127 = sbr.rel (%p125) target = $region16
        $region15: #{tpu_custom_call.1} parent=11 // pred_region
          _
        $region16: #{tpu_custom_call.1} parent=11 // pred_fallthru
          _
        // Predicated region
        $region17: #{tpu_custom_call.1} parent=11 // pred_check
          %p128 = pneg %p58
        $region18: #{tpu_custom_call.1} parent=11 // pred_check_branch
          %130 = sbr.rel (%p128) target = $region20
        $region19: #{tpu_custom_call.1} parent=11 // pred_region
          _
        $region20: #{tpu_custom_call.1} parent=11 // pred_fallthru
          _
      $region12: #{tpu_custom_call.1} parent=5 // pred_fallthru
        _
      %p131 = scmp.lt.s32.totalorder %s16, 2
      // Predicated region
      $region21: #{tpu_custom_call.1} parent=5 // pred_check
        %p132 = pneg %p131
      $region22: #{tpu_custom_call.1} parent=5 // pred_check_branch
        %134 = sbr.rel (%p132) target = $region24
      $region23: #{tpu_custom_call.1} parent=5 // pred_region
        // Predicated region
        $region25: #{tpu_custom_call.1} parent=23 // pred_check
          %p135 = pneg %p78
        $region26: #{tpu_custom_call.1} parent=23 // pred_check_branch
          %137 = sbr.rel (%p135) target = $region28
        $region27: #{tpu_custom_call.1} parent=23 // pred_region
          %s138 = sand.u32 %s68, 1
          %s139 = scalar_lea.sflag [#allocation5], %s138
          %s140 = sand.u32 %s68, 1
          %s141 = smul.addr %s140, 64
          %s142 = scalar_lea.vmem [#allocation4], %s141
          %s144 = ssub.s32 1024, 1024
          %145 = vsyncadd %s139, %s144
          %s146 = smul.addr %s16, 8
          %s147 = smul.addr %s146, 128
          %s148 = scalar_lea.hbm %s2, %s147
          %s149 = sshll.u32 %s142, 4
          %s150 = int_to_ptr.vmem [resolvable:$true] %s149
          %155 = dma.hbm_to_vmem [thread:$0]  %s148, 1024, %s150, %s139, 128, 128, 8
        $region28: #{tpu_custom_call.1} parent=23 // pred_fallthru
          _
      $region24: #{tpu_custom_call.1} parent=5 // pred_fallthru
        _
      %p156 = scmp.le.s32.totalorder 1, %s16
      %p157 = scmp.lt.s32.totalorder %s16, 3
      %p158 = pnand %p156, %p157
      %p159 = pneg %p158
      // Predicated region
      $region29: #{tpu_custom_call.1} parent=5 // pred_check
        _
      $region30: #{tpu_custom_call.1} parent=5 // pred_check_branch
        %161 = sbr.rel (%p158) target = $region32
      $region31: #{tpu_custom_call.1} parent=5 // pred_region
        %s162 = ssub.s32 %s16, 1
        %s163 = sand.u32 %s71, 1
        %s164 = scalar_lea.sflag [#allocation5], %s163
        %s165 = sand.u32 %s71, 1
        %s166 = smul.addr %s165, 64
        %s167 = scalar_lea.vmem [#allocation4], %s166
        // Predicated region
        $region33: #{tpu_custom_call.1} parent=31 // pred_check
          %p168 = pneg %p84
        $region34: #{tpu_custom_call.1} parent=31 // pred_check_branch
          %170 = sbr.rel (%p168) target = $region36
        $region35: #{tpu_custom_call.1} parent=31 // pred_region
          %171 = dma.done %s164, 1024
        $region36: #{tpu_custom_call.1} parent=31 // pred_fallthru
          _
        %p172 = pneg %p37
        %p173 = pneg %p34
        %p174 = pneg %p58
        %p175 = pneg %p55
        %s176 = sand.u32 %s71, 1
        %s177 = scalar_lea.sflag [#allocation5], %s176
        %s178 = sand.u32 %s71, 1
        %s179 = smul.addr %s178, 64
        %s180 = scalar_lea.vmem [#allocation4], %s179
        %p181 = pneg %p84
        %p182 = pneg %p81
        %p183 = pneg %p110
        %p184 = pneg %p107
        %s185 = sand.u32 %s97, 1
        %s186 = scalar_lea.sflag [#allocation6], %s185
        %s187 = sand.u32 %s97, 1
        %s188 = smul.addr %s187, 16
        %s189 = scalar_lea.vmem [#allocation7], %s188
        %vm190 = vcmask 408928
        %191 = vst.msk [vmem:[#allocation2] sm:$0xff] %vm190, 0.0
        %192 = vst.msk [vmem:[#allocation2 + $0x8] sm:$0xff] %vm190, 0.0
        %vm193 = vcmask 406880
        %194 = vst.msk [vmem:[#allocation2 + $0x10] sm:$0x3f] %vm193, 0.0
        %v195 = vld [vmem:[%s167] sm:$0xff]
        %v196 = vld [vmem:[%s167 + $0x8] sm:$0xff]
        %s197 = scalar_lea.vmem %s167, 16 [#allocation4]
        %v198 = vld [vmem:[%s197] sm:$0xff]
        %v199 = vld [vmem:[%s197 + $0x8] sm:$0xff]
        %v200 = vadd.f32 %v195, %v198
        %v201 = vadd.f32 %v196, %v199
        %v202 = vmax.f32 %v195, %v198
        %v203 = vmax.f32 %v196, %v199
        %s204 = scalar_lea.vmem %s167, 32 [#allocation4]
        %v205 = vld [vmem:[%s204] sm:$0xff]
        %v206 = vld [vmem:[%s204 + $0x8] sm:$0xff]
        %v207 = vadd.f32 %v200, %v205
        %v208 = vadd.f32 %v201, %v206
        %v209 = vmax.f32 %v202, %v205
        %v210 = vmax.f32 %v203, %v206
        %s211 = scalar_lea.vmem %s167, 48 [#allocation4]
        %v212 = vld [vmem:[%s211] sm:$0xff]
        %v213 = vld [vmem:[%s211 + $0x8] sm:$0xff]
        %v214 = vadd.f32 %v207, %v212
        %v215 = vadd.f32 %v208, %v213
        %v216 = vmax.f32 %v209, %v212
        %v217 = vmax.f32 %v210, %v213
        %v218 = vmul.f32 %v214, 0.25
        %v219 = vmul.f32 %v215, 0.25
        %222 = vrot.lane.b32.xlu0 %v218, 3
        %v223 = vpop.permute.xlu0 %222
        %224 = vrot.lane.b32.xlu0 %v219, 3
        %v225 = vpop.permute.xlu0 %224
        %vm228 = vcmask 154648
        %229 = vst.msk [vmem:[#allocation2 + $0x3] sm:$0xff] %vm228, %v223
        %230 = vst.msk [vmem:[#allocation2 + $0xb] sm:$0xff] %vm228, %v225
        %vm231 = vcmask 148505
        %232 = vst.msk [vmem:[#allocation2 + $0x1] sm:$0x2] %vm231, %v223
        %vm233 = vcmask 153630
        %234 = vst.msk [vmem:[#allocation2 + $0xd] sm:$0x40] %vm233, %v225
        %vm235 = vcmask 149530
        %236 = vst.msk [vmem:[#allocation2 - $0x1] sm:$0x4] %vm235, %v223
        %vm237 = vcmask 152605
        %238 = vst.msk [vmem:[#allocation2 + $0xf] sm:$0x20] %vm237, %v225
        %vm239 = vcmask 150555
        %240 = vst.msk [vmem:[#allocation2 - $0x3] sm:$0x8] %vm239, %v223
        %vm241 = vcmask 151580
        %242 = vst.msk [vmem:[#allocation2 + $0x11] sm:$0x10] %vm241, %v225
        %v243 = vld [vmem:[#allocation2] sm:$0xff]
        %v244 = vld [vmem:[#allocation2 + $0x8] sm:$0xff]
        %v245 = vld [vmem:[#allocation2 + $0x10] sm:$0x3f]
        %249 = vrot.lane.b32.xlu0 %v243, 126
        %v250 = vpop.permute.xlu0 %249
        %251 = vrot.lane.b32.xlu0 %v244, 126
        %v252 = vpop.permute.xlu0 %251
        %253 = vrot.lane.b32.xlu0 %v245, 126
        %v254 = vpop.permute.xlu0 %253
        %vm258 = vcmask 23568
        %259 = vst.msk [vmem:[#allocation2] sm:$0xff] %vm258, %v250
        %260 = vst.msk [vmem:[#allocation2 + $0x8] sm:$0xff] %vm258, %v252
        %vm261 = vcmask 21520
        %262 = vst.msk [vmem:[#allocation2 + $0x10] sm:$0x3f] %vm261, %v254
        %v263 = vld [vmem:[#allocation2] sm:$0xff]
        %v264 = vld [vmem:[#allocation2 + $0x8] sm:$0xff]
        %v265 = vld [vmem:[#allocation2 + $0x10] sm:$0x3f]
        %269 = vrot.lane.b32.xlu0 %v263, 2
        %v270 = vpop.permute.xlu0 %269
        %271 = vrot.lane.b32.xlu0 %v264, 2
        %v272 = vpop.permute.xlu0 %271
        %273 = vrot.lane.b32.xlu0 %v265, 2
        %v274 = vpop.permute.xlu0 %273
        %vm278 = vcmask 162968
        %279 = vst.msk [vmem:[#allocation2] sm:$0xff] %vm278, %v270
        %280 = vst.msk [vmem:[#allocation2 + $0x8] sm:$0xff] %vm278, %v272
        %vm281 = vcmask 160920
        %282 = vst.msk [vmem:[#allocation2 + $0x10] sm:$0x3f] %vm281, %v274
        %v283 = vld [vmem:[#allocation2] sm:$0xff]
        %v284 = vld [vmem:[#allocation2 + $0x8] sm:$0xff]
        %v285 = vld [vmem:[#allocation2 + $0x10] sm:$0x3f]
        %289 = vrot.lane.b32.xlu0 %v283, 124
        %v290 = vpop.permute.xlu0 %289
        %291 = vrot.lane.b32.xlu0 %v284, 124
        %v292 = vpop.permute.xlu0 %291
        %293 = vrot.lane.b32.xlu0 %v285, 124
        %v294 = vpop.permute.xlu0 %293
        %vm298 = vcmask 15368
        %299 = vst.msk [vmem:[#allocation2] sm:$0xff] %vm298, %v290
        %300 = vst.msk [vmem:[#allocation2 + $0x8] sm:$0xff] %vm298, %v292
        %vm301 = vcmask 13320
        %302 = vst.msk [vmem:[#allocation2 + $0x10] sm:$0x3f] %vm301, %v294
        %v303 = vld [vmem:[#allocation2] sm:$0xff]
        %v304 = vld [vmem:[#allocation2 + $0x8] sm:$0xff]
        %v305 = vld [vmem:[#allocation2 + $0x10] sm:$0x3f]
        %309 = vrot.lane.b32.xlu0 %v303, 4
        %v310 = vpop.permute.xlu0 %309
        %311 = vrot.lane.b32.xlu0 %v304, 4
        %v312 = vpop.permute.xlu0 %311
        %313 = vrot.lane.b32.xlu0 %v305, 4
        %v314 = vpop.permute.xlu0 %313
        %vm318 = vcmask 171168
        %319 = vst.msk [vmem:[#allocation2] sm:$0xff] %vm318, %v310
        %320 = vst.msk [vmem:[#allocation2 + $0x8] sm:$0xff] %vm318, %v312
        %vm321 = vcmask 169120
        %322 = vst.msk [vmem:[#allocation2 + $0x10] sm:$0x3f] %vm321, %v314
        %v323 = vld [vmem:[#allocation2] sm:$0xff]
        %v324 = vld [vmem:[#allocation2 + $0x8] sm:$0xff]
        %v325 = vld [vmem:[#allocation2 + $0x10] sm:$0x3f]
        %329 = vrot.lane.b32.xlu0 %v323, 122
        %v330 = vpop.permute.xlu0 %329
        %331 = vrot.lane.b32.xlu0 %v324, 122
        %v332 = vpop.permute.xlu0 %331
        %333 = vrot.lane.b32.xlu0 %v325, 122
        %v334 = vpop.permute.xlu0 %333
        %vm338 = vcmask 7168
        %339 = vst.msk [vmem:[#allocation2] sm:$0xff] %vm338, %v330
        %340 = vst.msk [vmem:[#allocation2 + $0x8] sm:$0xff] %vm338, %v332
        %vm341 = vcmask 5120
        %342 = vst.msk [vmem:[#allocation2 + $0x10] sm:$0x3f] %vm341, %v334
        %v343 = vld [vmem:[#allocation2] sm:$0xff]
        %v344 = vld [vmem:[#allocation2 + $0x8] sm:$0xff]
        %v345 = vld [vmem:[#allocation2 + $0x10] sm:$0x3f]
        %349 = vrot.lane.b32.xlu0 %v343, 6
        %v350 = vpop.permute.xlu0 %349
        %351 = vrot.lane.b32.xlu0 %v344, 6
        %v352 = vpop.permute.xlu0 %351
        %353 = vrot.lane.b32.xlu0 %v345, 6
        %v354 = vpop.permute.xlu0 %353
        %vm358 = vcmask 179368
        %359 = vst.msk [vmem:[#allocation2] sm:$0xff] %vm358, %v350
        %360 = vst.msk [vmem:[#allocation2 + $0x8] sm:$0xff] %vm358, %v352
        %vm361 = vcmask 177320
        %362 = vst.msk [vmem:[#allocation2 + $0x10] sm:$0x3f] %vm361, %v354
        %365 = vrot.lane.b32.xlu0 %v216, 25
        %v366 = vpop.permute.xlu0 %365
        %367 = vrot.lane.b32.xlu0 %v217, 25
        %v368 = vpop.permute.xlu0 %367
        %vm371 = vcmask 335048
        %372 = vst.msk [vmem:[#allocation2 + $0x3] sm:$0xff] %vm371, %v366
        %373 = vst.msk [vmem:[#allocation2 + $0xb] sm:$0xff] %vm371, %v368
        %vm374 = vcmask 328905
        %375 = vst.msk [vmem:[#allocation2 + $0x1] sm:$0x2] %vm374, %v366
        %vm376 = vcmask 334030
        %377 = vst.msk [vmem:[#allocation2 + $0xd] sm:$0x40] %vm376, %v368
        %vm378 = vcmask 329930
        %379 = vst.msk [vmem:[#allocation2 - $0x1] sm:$0x4] %vm378, %v366
        %vm380 = vcmask 333005
        %381 = vst.msk [vmem:[#allocation2 + $0xf] sm:$0x20] %vm380, %v368
        %vm382 = vcmask 330955
        %383 = vst.msk [vmem:[#allocation2 - $0x3] sm:$0x8] %vm382, %v366
        %vm384 = vcmask 331980
        %385 = vst.msk [vmem:[#allocation2 + $0x11] sm:$0x10] %vm384, %v368
        %v386 = vld [vmem:[#allocation2] sm:$0xff]
        %v387 = vld [vmem:[#allocation2 + $0x8] sm:$0xff]
        %v388 = vld [vmem:[#allocation2 + $0x10] sm:$0x3f]
        %392 = vrot.lane.b32.xlu0 %v386, 126
        %v393 = vpop.permute.xlu0 %392
        %394 = vrot.lane.b32.xlu0 %v387, 126
        %v395 = vpop.permute.xlu0 %394
        %396 = vrot.lane.b32.xlu0 %v388, 126
        %v397 = vpop.permute.xlu0 %396
        %vm401 = vcmask 203968
        %402 = vst.msk [vmem:[#allocation2] sm:$0xff] %vm401, %v393
        %403 = vst.msk [vmem:[#allocation2 + $0x8] sm:$0xff] %vm401, %v395
        %vm404 = vcmask 201920
        %405 = vst.msk [vmem:[#allocation2 + $0x10] sm:$0x3f] %vm404, %v397
        %v406 = vld [vmem:[#allocation2] sm:$0xff]
        %v407 = vld [vmem:[#allocation2 + $0x8] sm:$0xff]
        %v408 = vld [vmem:[#allocation2 + $0x10] sm:$0x3f]
        %412 = vrot.lane.b32.xlu0 %v406, 2
        %v413 = vpop.permute.xlu0 %412
        %414 = vrot.lane.b32.xlu0 %v407, 2
        %v415 = vpop.permute.xlu0 %414
        %416 = vrot.lane.b32.xlu0 %v408, 2
        %v417 = vpop.permute.xlu0 %416
        %vm421 = vcmask 343368
        %422 = vst.msk [vmem:[#allocation2] sm:$0xff] %vm421, %v413
        %423 = vst.msk [vmem:[#allocation2 + $0x8] sm:$0xff] %vm421, %v415
        %vm424 = vcmask 341320
        %425 = vst.msk [vmem:[#allocation2 + $0x10] sm:$0x3f] %vm424, %v417
        %v426 = vld [vmem:[#allocation2] sm:$0xff]
        %v427 = vld [vmem:[#allocation2 + $0x8] sm:$0xff]
        %v428 = vld [vmem:[#allocation2 + $0x10] sm:$0x3f]
        %432 = vrot.lane.b32.xlu0 %v426, 124
        %v433 = vpop.permute.xlu0 %432
        %434 = vrot.lane.b32.xlu0 %v427, 124
        %v435 = vpop.permute.xlu0 %434
        %436 = vrot.lane.b32.xlu0 %v428, 124
        %v437 = vpop.permute.xlu0 %436
        %vm441 = vcmask 195768
        %442 = vst.msk [vmem:[#allocation2] sm:$0xff] %vm441, %v433
        %443 = vst.msk [vmem:[#allocation2 + $0x8] sm:$0xff] %vm441, %v435
        %vm444 = vcmask 193720
        %445 = vst.msk [vmem:[#allocation2 + $0x10] sm:$0x3f] %vm444, %v437
        %v446 = vld [vmem:[#allocation2] sm:$0xff]
        %v447 = vld [vmem:[#allocation2 + $0x8] sm:$0xff]
        %v448 = vld [vmem:[#allocation2 + $0x10] sm:$0x3f]
        %452 = vrot.lane.b32.xlu0 %v446, 4
        %v453 = vpop.permute.xlu0 %452
        %454 = vrot.lane.b32.xlu0 %v447, 4
        %v455 = vpop.permute.xlu0 %454
        %456 = vrot.lane.b32.xlu0 %v448, 4
        %v457 = vpop.permute.xlu0 %456
        %vm461 = vcmask 351568
        %462 = vst.msk [vmem:[#allocation2] sm:$0xff] %vm461, %v453
        %463 = vst.msk [vmem:[#allocation2 + $0x8] sm:$0xff] %vm461, %v455
        %vm464 = vcmask 349520
        %465 = vst.msk [vmem:[#allocation2 + $0x10] sm:$0x3f] %vm464, %v457
        %v466 = vld [vmem:[#allocation2] sm:$0xff]
        %v467 = vld [vmem:[#allocation2 + $0x8] sm:$0xff]
        %v468 = vld [vmem:[#allocation2 + $0x10] sm:$0x3f]
        %472 = vrot.lane.b32.xlu0 %v466, 122
        %v473 = vpop.permute.xlu0 %472
        %474 = vrot.lane.b32.xlu0 %v467, 122
        %v475 = vpop.permute.xlu0 %474
        %476 = vrot.lane.b32.xlu0 %v468, 122
        %v477 = vpop.permute.xlu0 %476
        %vm481 = vcmask 187568
        %482 = vst.msk [vmem:[#allocation2] sm:$0xff] %vm481, %v473
        %483 = vst.msk [vmem:[#allocation2 + $0x8] sm:$0xff] %vm481, %v475
        %vm484 = vcmask 185520
        %485 = vst.msk [vmem:[#allocation2 + $0x10] sm:$0x3f] %vm484, %v477
        %v486 = vld [vmem:[#allocation2] sm:$0xff]
        %v487 = vld [vmem:[#allocation2 + $0x8] sm:$0xff]
        %v488 = vld [vmem:[#allocation2 + $0x10] sm:$0x3f]
        %492 = vrot.lane.b32.xlu0 %v486, 6
        %v493 = vpop.permute.xlu0 %492
        %494 = vrot.lane.b32.xlu0 %v487, 6
        %v495 = vpop.permute.xlu0 %494
        %496 = vrot.lane.b32.xlu0 %v488, 6
        %v497 = vpop.permute.xlu0 %496
        %vm501 = vcmask 359768
        %502 = vst.msk [vmem:[#allocation2] sm:$0xff] %vm501, %v493
        %503 = vst.msk [vmem:[#allocation2 + $0x8] sm:$0xff] %vm501, %v495
        %vm504 = vcmask 357720
        %505 = vst.msk [vmem:[#allocation2 + $0x10] sm:$0x3f] %vm504, %v497
        %v506 = vld [vmem:[#allocation2] sm:$0xff]
        %v507 = vld [vmem:[#allocation2 + $0x8] sm:$0xff]
        %v508 = vld [vmem:[#allocation2 + $0x10] sm:$0x3f]
        %v509 = vld [vmem:[%s0] sm:$0x1]
        %v510 = vlaneseq
        %v511 = vshrl.u32 %v510, 7
        %v512 = vsub.s32 0, %v511
        %v513 = vrot.slane %v509, %v512
        %v514 = vmul.f32 %v506, %v513
        %v515 = vmul.f32 %v507, %v513
        %v516 = vadd.f32 %v514, 0.0
        %v517 = vadd.f32 %v515, 0.0
        %v518 = vld [vmem:[%s0 + $0x1] sm:$0x1]
        %v519 = vlaneseq
        %v520 = vshrl.u32 %v519, 7
        %v521 = vsub.s32 0, %v520
        %v522 = vrot.slane %v518, %v521
        %524 = vrot.lane.b32.xlu0 %v522, 1
        %v525 = vpop.permute.xlu0 %524
        %v527 = vmul.f32 %v506, %v525
        %v528 = vmul.f32 %v507, %v525
        %531 = vrot.lane.b32.xlu0 %v527, 127
        %v532 = vpop.permute.xlu0 %531
        %533 = vrot.lane.b32.xlu0 %v528, 127
        %v534 = vpop.permute.xlu0 %533
        %v537 = vadd.f32 %v516, %v532
        %v538 = vadd.f32 %v517, %v534
        %v539 = vld [vmem:[%s0 + $0x2] sm:$0x1]
        %v540 = vlaneseq
        %v541 = vshrl.u32 %v540, 7
        %v542 = vsub.s32 0, %v541
        %v543 = vrot.slane %v539, %v542
        %545 = vrot.lane.b32.xlu0 %v543, 2
        %v546 = vpop.permute.xlu0 %545
        %v548 = vmul.f32 %v506, %v546
        %v549 = vmul.f32 %v507, %v546
        %552 = vrot.lane.b32.xlu0 %v548, 126
        %v553 = vpop.permute.xlu0 %552
        %554 = vrot.lane.b32.xlu0 %v549, 126
        %v555 = vpop.permute.xlu0 %554
        %v558 = vadd.f32 %v537, %v553
        %v559 = vadd.f32 %v538, %v555
        %v560 = vld [vmem:[%s0 + $0x3] sm:$0x1]
        %v561 = vlaneseq
        %v562 = vshrl.u32 %v561, 7
        %v563 = vsub.s32 0, %v562
        %v564 = vrot.slane %v560, %v563
        %566 = vrot.lane.b32.xlu0 %v564, 3
        %v567 = vpop.permute.xlu0 %566
        %v569 = vmul.f32 %v506, %v567
        %v570 = vmul.f32 %v507, %v567
        %573 = vrot.lane.b32.xlu0 %v569, 125
        %v574 = vpop.permute.xlu0 %573
        %575 = vrot.lane.b32.xlu0 %v570, 125
        %v576 = vpop.permute.xlu0 %575
        %v579 = vadd.f32 %v558, %v574
        %v580 = vadd.f32 %v559, %v576
        %v581 = vld [vmem:[%s0 + $0x4] sm:$0x1]
        %v582 = vlaneseq
        %v583 = vshrl.u32 %v582, 7
        %v584 = vsub.s32 0, %v583
        %v585 = vrot.slane %v581, %v584
        %587 = vrot.lane.b32.xlu0 %v585, 4
        %v588 = vpop.permute.xlu0 %587
        %v590 = vmul.f32 %v506, %v588
        %v591 = vmul.f32 %v507, %v588
        %594 = vrot.lane.b32.xlu0 %v590, 124
        %v595 = vpop.permute.xlu0 %594
        %596 = vrot.lane.b32.xlu0 %v591, 124
        %v597 = vpop.permute.xlu0 %596
        %v600 = vadd.f32 %v579, %v595
        %v601 = vadd.f32 %v580, %v597
        %v602 = vld [vmem:[%s0 + $0x5] sm:$0x1]
        %v603 = vlaneseq
        %v604 = vshrl.u32 %v603, 7
        %v605 = vsub.s32 0, %v604
        %v606 = vrot.slane %v602, %v605
        %608 = vrot.lane.b32.xlu0 %v606, 5
        %v609 = vpop.permute.xlu0 %608
        %v611 = vmul.f32 %v506, %v609
        %v612 = vmul.f32 %v507, %v609
        %615 = vrot.lane.b32.xlu0 %v611, 123
        %v616 = vpop.permute.xlu0 %615
        %617 = vrot.lane.b32.xlu0 %v612, 123
        %v618 = vpop.permute.xlu0 %617
        %v621 = vadd.f32 %v600, %v616
        %v622 = vadd.f32 %v601, %v618
        %v623 = vld [vmem:[%s0 + $0x6] sm:$0x1]
        %v624 = vlaneseq
        %v625 = vshrl.u32 %v624, 7
        %v626 = vsub.s32 0, %v625
        %v627 = vrot.slane %v623, %v626
        %629 = vrot.lane.b32.xlu0 %v627, 6
        %v630 = vpop.permute.xlu0 %629
        %v632 = vmul.f32 %v506, %v630
        %v633 = vmul.f32 %v507, %v630
        %636 = vrot.lane.b32.xlu0 %v632, 122
        %v637 = vpop.permute.xlu0 %636
        %638 = vrot.lane.b32.xlu0 %v633, 122
        %v639 = vpop.permute.xlu0 %638
        %v642 = vadd.f32 %v621, %v637
        %v643 = vadd.f32 %v622, %v639
        %v644 = vld [vmem:[%s0 + $0x7] sm:$0x1]
        %v645 = vlaneseq
        %v646 = vshrl.u32 %v645, 7
        %v647 = vsub.s32 0, %v646
        %v648 = vrot.slane %v644, %v647
        %v649 = vmul.f32 %v506, %v648
        %v650 = vmul.f32 %v507, %v648
        %v651 = vmul.f32 %v508, %v648
        %vm655 = vcmask 1046528
        %v656 = vrot.slane %v649, 1
        %v657 = vrot.slane %v650, 1
        %v658 = vsel %vm655, %v656, %v657
        %v659 = vrot.slane %v651, 1
        %v660 = vsel %vm655, %v657, %v659
        %v663 = vadd.f32 %v642, %v658
        %v664 = vadd.f32 %v643, %v660
        %v665 = vld [vmem:[%s0 + $0x8] sm:$0x1]
        %v666 = vlaneseq
        %v667 = vshrl.u32 %v666, 7
        %v668 = vsub.s32 0, %v667
        %v669 = vrot.slane %v665, %v668
        %671 = vrot.lane.b32.xlu0 %v669, 1
        %v672 = vpop.permute.xlu0 %671
        %v674 = vmul.f32 %v506, %v672
        %v675 = vmul.f32 %v507, %v672
        %v676 = vmul.f32 %v508, %v672
        %v680 = vrot.slane %v674, 1
        %v681 = vrot.slane %v675, 1
        %v682 = vsel %vm655, %v680, %v681
        %v683 = vrot.slane %v676, 1
        %v684 = vsel %vm655, %v681, %v683
        %685 = vrot.lane.b32.xlu0 %v682, 127
        %v686 = vpop.permute.xlu0 %685
        %687 = vrot.lane.b32.xlu0 %v684, 127
        %v688 = vpop.permute.xlu0 %687
        %v691 = vadd.f32 %v663, %v686
        %v692 = vadd.f32 %v664, %v688
        %v693 = vld [vmem:[%s0 + $0x9] sm:$0x1]
        %v694 = vlaneseq
        %v695 = vshrl.u32 %v694, 7
        %v696 = vsub.s32 0, %v695
        %v697 = vrot.slane %v693, %v696
        %699 = vrot.lane.b32.xlu0 %v697, 2
        %v700 = vpop.permute.xlu0 %699
        %v702 = vmul.f32 %v506, %v700
        %v703 = vmul.f32 %v507, %v700
        %v704 = vmul.f32 %v508, %v700
        %v708 = vrot.slane %v702, 1
        %v709 = vrot.slane %v703, 1
        %v710 = vsel %vm655, %v708, %v709
        %v711 = vrot.slane %v704, 1
        %v712 = vsel %vm655, %v709, %v711
        %713 = vrot.lane.b32.xlu0 %v710, 126
        %v714 = vpop.permute.xlu0 %713
        %715 = vrot.lane.b32.xlu0 %v712, 126
        %v716 = vpop.permute.xlu0 %715
        %v719 = vadd.f32 %v691, %v714
        %v720 = vadd.f32 %v692, %v716
        %v721 = vld [vmem:[%s0 + $0xa] sm:$0x1]
        %v722 = vlaneseq
        %v723 = vshrl.u32 %v722, 7
        %v724 = vsub.s32 0, %v723
        %v725 = vrot.slane %v721, %v724
        %727 = vrot.lane.b32.xlu0 %v725, 3
        %v728 = vpop.permute.xlu0 %727
        %v730 = vmul.f32 %v506, %v728
        %v731 = vmul.f32 %v507, %v728
        %v732 = vmul.f32 %v508, %v728
        %v736 = vrot.slane %v730, 1
        %v737 = vrot.slane %v731, 1
        %v738 = vsel %vm655, %v736, %v737
        %v739 = vrot.slane %v732, 1
        %v740 = vsel %vm655, %v737, %v739
        %741 = vrot.lane.b32.xlu0 %v738, 125
        %v742 = vpop.permute.xlu0 %741
        %743 = vrot.lane.b32.xlu0 %v740, 125
        %v744 = vpop.permute.xlu0 %743
        %v747 = vadd.f32 %v719, %v742
        %v748 = vadd.f32 %v720, %v744
        %v749 = vld [vmem:[%s0 + $0xb] sm:$0x1]
        %v750 = vlaneseq
        %v751 = vshrl.u32 %v750, 7
        %v752 = vsub.s32 0, %v751
        %v753 = vrot.slane %v749, %v752
        %755 = vrot.lane.b32.xlu0 %v753, 4
        %v756 = vpop.permute.xlu0 %755
        %v758 = vmul.f32 %v506, %v756
        %v759 = vmul.f32 %v507, %v756
        %v760 = vmul.f32 %v508, %v756
        %v764 = vrot.slane %v758, 1
        %v765 = vrot.slane %v759, 1
        %v766 = vsel %vm655, %v764, %v765
        %v767 = vrot.slane %v760, 1
        %v768 = vsel %vm655, %v765, %v767
        %769 = vrot.lane.b32.xlu0 %v766, 124
        %v770 = vpop.permute.xlu0 %769
        %771 = vrot.lane.b32.xlu0 %v768, 124
        %v772 = vpop.permute.xlu0 %771
        %v775 = vadd.f32 %v747, %v770
        %v776 = vadd.f32 %v748, %v772
        %v777 = vld [vmem:[%s0 + $0xc] sm:$0x1]
        %v778 = vlaneseq
        %v779 = vshrl.u32 %v778, 7
        %v780 = vsub.s32 0, %v779
        %v781 = vrot.slane %v777, %v780
        %783 = vrot.lane.b32.xlu0 %v781, 5
        %v784 = vpop.permute.xlu0 %783
        %v786 = vmul.f32 %v506, %v784
        %v787 = vmul.f32 %v507, %v784
        %v788 = vmul.f32 %v508, %v784
        %v792 = vrot.slane %v786, 1
        %v793 = vrot.slane %v787, 1
        %v794 = vsel %vm655, %v792, %v793
        %v795 = vrot.slane %v788, 1
        %v796 = vsel %vm655, %v793, %v795
        %797 = vrot.lane.b32.xlu0 %v794, 123
        %v798 = vpop.permute.xlu0 %797
        %799 = vrot.lane.b32.xlu0 %v796, 123
        %v800 = vpop.permute.xlu0 %799
        %v803 = vadd.f32 %v775, %v798
        %v804 = vadd.f32 %v776, %v800
        %v805 = vld [vmem:[%s0 + $0xd] sm:$0x1]
        %v806 = vlaneseq
        %v807 = vshrl.u32 %v806, 7
        %v808 = vsub.s32 0, %v807
        %v809 = vrot.slane %v805, %v808
        %811 = vrot.lane.b32.xlu0 %v809, 6
        %v812 = vpop.permute.xlu0 %811
        %v814 = vmul.f32 %v506, %v812
        %v815 = vmul.f32 %v507, %v812
        %v816 = vmul.f32 %v508, %v812
        %v820 = vrot.slane %v814, 1
        %v821 = vrot.slane %v815, 1
        %v822 = vsel %vm655, %v820, %v821
        %v823 = vrot.slane %v816, 1
        %v824 = vsel %vm655, %v821, %v823
        %825 = vrot.lane.b32.xlu0 %v822, 122
        %v826 = vpop.permute.xlu0 %825
        %827 = vrot.lane.b32.xlu0 %v824, 122
        %v828 = vpop.permute.xlu0 %827
        %v831 = vadd.f32 %v803, %v826
        %v832 = vadd.f32 %v804, %v828
        %v833 = vld [vmem:[%s0 + $0xe] sm:$0x1]
        %v834 = vlaneseq
        %v835 = vshrl.u32 %v834, 7
        %v836 = vsub.s32 0, %v835
        %v837 = vrot.slane %v833, %v836
        %v838 = vmul.f32 %v506, %v837
        %v839 = vmul.f32 %v507, %v837
        %v840 = vmul.f32 %v508, %v837
        %vm844 = vcmask 1045504
        %v845 = vrot.slane %v838, 2
        %v846 = vrot.slane %v839, 2
        %v847 = vsel %vm844, %v845, %v846
        %v848 = vrot.slane %v840, 2
        %v849 = vsel %vm844, %v846, %v848
        %v852 = vadd.f32 %v831, %v847
        %v853 = vadd.f32 %v832, %v849
        %v854 = vld [vmem:[%s0 + $0xf] sm:$0x1]
        %v855 = vlaneseq
        %v856 = vshrl.u32 %v855, 7
        %v857 = vsub.s32 0, %v856
        %v858 = vrot.slane %v854, %v857
        %860 = vrot.lane.b32.xlu0 %v858, 1
        %v861 = vpop.permute.xlu0 %860
        %v863 = vmul.f32 %v506, %v861
        %v864 = vmul.f32 %v507, %v861
        %v865 = vmul.f32 %v508, %v861
        %v869 = vrot.slane %v863, 2
        %v870 = vrot.slane %v864, 2
        %v871 = vsel %vm844, %v869, %v870
        %v872 = vrot.slane %v865, 2
        %v873 = vsel %vm844, %v870, %v872
        %874 = vrot.lane.b32.xlu0 %v871, 127
        %v875 = vpop.permute.xlu0 %874
        %876 = vrot.lane.b32.xlu0 %v873, 127
        %v877 = vpop.permute.xlu0 %876
        %v880 = vadd.f32 %v852, %v875
        %v881 = vadd.f32 %v853, %v877
        %v882 = vld [vmem:[%s0 + $0x10] sm:$0x1]
        %v883 = vlaneseq
        %v884 = vshrl.u32 %v883, 7
        %v885 = vsub.s32 0, %v884
        %v886 = vrot.slane %v882, %v885
        %888 = vrot.lane.b32.xlu0 %v886, 2
        %v889 = vpop.permute.xlu0 %888
        %v891 = vmul.f32 %v506, %v889
        %v892 = vmul.f32 %v507, %v889
        %v893 = vmul.f32 %v508, %v889
        %v897 = vrot.slane %v891, 2
        %v898 = vrot.slane %v892, 2
        %v899 = vsel %vm844, %v897, %v898
        %v900 = vrot.slane %v893, 2
        %v901 = vsel %vm844, %v898, %v900
        %902 = vrot.lane.b32.xlu0 %v899, 126
        %v903 = vpop.permute.xlu0 %902
        %904 = vrot.lane.b32.xlu0 %v901, 126
        %v905 = vpop.permute.xlu0 %904
        %v908 = vadd.f32 %v880, %v903
        %v909 = vadd.f32 %v881, %v905
        %v910 = vld [vmem:[%s0 + $0x11] sm:$0x1]
        %v911 = vlaneseq
        %v912 = vshrl.u32 %v911, 7
        %v913 = vsub.s32 0, %v912
        %v914 = vrot.slane %v910, %v913
        %916 = vrot.lane.b32.xlu0 %v914, 3
        %v917 = vpop.permute.xlu0 %916
        %v919 = vmul.f32 %v506, %v917
        %v920 = vmul.f32 %v507, %v917
        %v921 = vmul.f32 %v508, %v917
        %v925 = vrot.slane %v919, 2
        %v926 = vrot.slane %v920, 2
        %v927 = vsel %vm844, %v925, %v926
        %v928 = vrot.slane %v921, 2
        %v929 = vsel %vm844, %v926, %v928
        %930 = vrot.lane.b32.xlu0 %v927, 125
        %v931 = vpop.permute.xlu0 %930
        %932 = vrot.lane.b32.xlu0 %v929, 125
        %v933 = vpop.permute.xlu0 %932
        %v936 = vadd.f32 %v908, %v931
        %v937 = vadd.f32 %v909, %v933
        %v938 = vld [vmem:[%s0 + $0x12] sm:$0x1]
        %v939 = vlaneseq
        %v940 = vshrl.u32 %v939, 7
        %v941 = vsub.s32 0, %v940
        %v942 = vrot.slane %v938, %v941
        %944 = vrot.lane.b32.xlu0 %v942, 4
        %v945 = vpop.permute.xlu0 %944
        %v947 = vmul.f32 %v506, %v945
        %v948 = vmul.f32 %v507, %v945
        %v949 = vmul.f32 %v508, %v945
        %v953 = vrot.slane %v947, 2
        %v954 = vrot.slane %v948, 2
        %v955 = vsel %vm844, %v953, %v954
        %v956 = vrot.slane %v949, 2
        %v957 = vsel %vm844, %v954, %v956
        %958 = vrot.lane.b32.xlu0 %v955, 124
        %v959 = vpop.permute.xlu0 %958
        %960 = vrot.lane.b32.xlu0 %v957, 124
        %v961 = vpop.permute.xlu0 %960
        %v964 = vadd.f32 %v936, %v959
        %v965 = vadd.f32 %v937, %v961
        %v966 = vld [vmem:[%s0 + $0x13] sm:$0x1]
        %v967 = vlaneseq
        %v968 = vshrl.u32 %v967, 7
        %v969 = vsub.s32 0, %v968
        %v970 = vrot.slane %v966, %v969
        %972 = vrot.lane.b32.xlu0 %v970, 5
        %v973 = vpop.permute.xlu0 %972
        %v975 = vmul.f32 %v506, %v973
        %v976 = vmul.f32 %v507, %v973
        %v977 = vmul.f32 %v508, %v973
        %v981 = vrot.slane %v975, 2
        %v982 = vrot.slane %v976, 2
        %v983 = vsel %vm844, %v981, %v982
        %v984 = vrot.slane %v977, 2
        %v985 = vsel %vm844, %v982, %v984
        %986 = vrot.lane.b32.xlu0 %v983, 123
        %v987 = vpop.permute.xlu0 %986
        %988 = vrot.lane.b32.xlu0 %v985, 123
        %v989 = vpop.permute.xlu0 %988
        %v992 = vadd.f32 %v964, %v987
        %v993 = vadd.f32 %v965, %v989
        %v994 = vld [vmem:[%s0 + $0x14] sm:$0x1]
        %v995 = vlaneseq
        %v996 = vshrl.u32 %v995, 7
        %v997 = vsub.s32 0, %v996
        %v998 = vrot.slane %v994, %v997
        %1000 = vrot.lane.b32.xlu0 %v998, 6
        %v1001 = vpop.permute.xlu0 %1000
        %v1003 = vmul.f32 %v506, %v1001
        %v1004 = vmul.f32 %v507, %v1001
        %v1005 = vmul.f32 %v508, %v1001
        %v1009 = vrot.slane %v1003, 2
        %v1010 = vrot.slane %v1004, 2
        %v1011 = vsel %vm844, %v1009, %v1010
        %v1012 = vrot.slane %v1005, 2
        %v1013 = vsel %vm844, %v1010, %v1012
        %1014 = vrot.lane.b32.xlu0 %v1011, 122
        %v1015 = vpop.permute.xlu0 %1014
        %1016 = vrot.lane.b32.xlu0 %v1013, 122
        %v1017 = vpop.permute.xlu0 %1016
        %v1020 = vadd.f32 %v992, %v1015
        %v1021 = vadd.f32 %v993, %v1017
        %v1022 = vld [vmem:[%s0 + $0x15] sm:$0x1]
        %v1023 = vlaneseq
        %v1024 = vshrl.u32 %v1023, 7
        %v1025 = vsub.s32 0, %v1024
        %v1026 = vrot.slane %v1022, %v1025
        %v1027 = vmul.f32 %v506, %v1026
        %v1028 = vmul.f32 %v507, %v1026
        %v1029 = vmul.f32 %v508, %v1026
        %vm1033 = vcmask 1044480
        %v1034 = vrot.slane %v1027, 3
        %v1035 = vrot.slane %v1028, 3
        %v1036 = vsel %vm1033, %v1034, %v1035
        %v1037 = vrot.slane %v1029, 3
        %v1038 = vsel %vm1033, %v1035, %v1037
        %v1041 = vadd.f32 %v1020, %v1036
        %v1042 = vadd.f32 %v1021, %v1038
        %v1043 = vld [vmem:[%s0 + $0x16] sm:$0x1]
        %v1044 = vlaneseq
        %v1045 = vshrl.u32 %v1044, 7
        %v1046 = vsub.s32 0, %v1045
        %v1047 = vrot.slane %v1043, %v1046
        %1049 = vrot.lane.b32.xlu0 %v1047, 1
        %v1050 = vpop.permute.xlu0 %1049
        %v1052 = vmul.f32 %v506, %v1050
        %v1053 = vmul.f32 %v507, %v1050
        %v1054 = vmul.f32 %v508, %v1050
        %v1058 = vrot.slane %v1052, 3
        %v1059 = vrot.slane %v1053, 3
        %v1060 = vsel %vm1033, %v1058, %v1059
        %v1061 = vrot.slane %v1054, 3
        %v1062 = vsel %vm1033, %v1059, %v1061
        %1063 = vrot.lane.b32.xlu0 %v1060, 127
        %v1064 = vpop.permute.xlu0 %1063
        %1065 = vrot.lane.b32.xlu0 %v1062, 127
        %v1066 = vpop.permute.xlu0 %1065
        %v1069 = vadd.f32 %v1041, %v1064
        %v1070 = vadd.f32 %v1042, %v1066
        %v1071 = vld [vmem:[%s0 + $0x17] sm:$0x1]
        %v1072 = vlaneseq
        %v1073 = vshrl.u32 %v1072, 7
        %v1074 = vsub.s32 0, %v1073
        %v1075 = vrot.slane %v1071, %v1074
        %1077 = vrot.lane.b32.xlu0 %v1075, 2
        %v1078 = vpop.permute.xlu0 %1077
        %v1080 = vmul.f32 %v506, %v1078
        %v1081 = vmul.f32 %v507, %v1078
        %v1082 = vmul.f32 %v508, %v1078
        %v1086 = vrot.slane %v1080, 3
        %v1087 = vrot.slane %v1081, 3
        %v1088 = vsel %vm1033, %v1086, %v1087
        %v1089 = vrot.slane %v1082, 3
        %v1090 = vsel %vm1033, %v1087, %v1089
        %1091 = vrot.lane.b32.xlu0 %v1088, 126
        %v1092 = vpop.permute.xlu0 %1091
        %1093 = vrot.lane.b32.xlu0 %v1090, 126
        %v1094 = vpop.permute.xlu0 %1093
        %v1097 = vadd.f32 %v1069, %v1092
        %v1098 = vadd.f32 %v1070, %v1094
        %v1099 = vld [vmem:[%s0 + $0x18] sm:$0x1]
        %v1100 = vlaneseq
        %v1101 = vshrl.u32 %v1100, 7
        %v1102 = vsub.s32 0, %v1101
        %v1103 = vrot.slane %v1099, %v1102
        %1105 = vrot.lane.b32.xlu0 %v1103, 3
        %v1106 = vpop.permute.xlu0 %1105
        %v1108 = vmul.f32 %v506, %v1106
        %v1109 = vmul.f32 %v507, %v1106
        %v1110 = vmul.f32 %v508, %v1106
        %v1114 = vrot.slane %v1108, 3
        %v1115 = vrot.slane %v1109, 3
        %v1116 = vsel %vm1033, %v1114, %v1115
        %v1117 = vrot.slane %v1110, 3
        %v1118 = vsel %vm1033, %v1115, %v1117
        %1119 = vrot.lane.b32.xlu0 %v1116, 125
        %v1120 = vpop.permute.xlu0 %1119
        %1121 = vrot.lane.b32.xlu0 %v1118, 125
        %v1122 = vpop.permute.xlu0 %1121
        %v1125 = vadd.f32 %v1097, %v1120
        %v1126 = vadd.f32 %v1098, %v1122
        %v1127 = vld [vmem:[%s0 + $0x19] sm:$0x1]
        %v1128 = vlaneseq
        %v1129 = vshrl.u32 %v1128, 7
        %v1130 = vsub.s32 0, %v1129
        %v1131 = vrot.slane %v1127, %v1130
        %1133 = vrot.lane.b32.xlu0 %v1131, 4
        %v1134 = vpop.permute.xlu0 %1133
        %v1136 = vmul.f32 %v506, %v1134
        %v1137 = vmul.f32 %v507, %v1134
        %v1138 = vmul.f32 %v508, %v1134
        %v1142 = vrot.slane %v1136, 3
        %v1143 = vrot.slane %v1137, 3
        %v1144 = vsel %vm1033, %v1142, %v1143
        %v1145 = vrot.slane %v1138, 3
        %v1146 = vsel %vm1033, %v1143, %v1145
        %1147 = vrot.lane.b32.xlu0 %v1144, 124
        %v1148 = vpop.permute.xlu0 %1147
        %1149 = vrot.lane.b32.xlu0 %v1146, 124
        %v1150 = vpop.permute.xlu0 %1149
        %v1153 = vadd.f32 %v1125, %v1148
        %v1154 = vadd.f32 %v1126, %v1150
        %v1155 = vld [vmem:[%s0 + $0x1a] sm:$0x1]
        %v1156 = vlaneseq
        %v1157 = vshrl.u32 %v1156, 7
        %v1158 = vsub.s32 0, %v1157
        %v1159 = vrot.slane %v1155, %v1158
        %1161 = vrot.lane.b32.xlu0 %v1159, 5
        %v1162 = vpop.permute.xlu0 %1161
        %v1164 = vmul.f32 %v506, %v1162
        %v1165 = vmul.f32 %v507, %v1162
        %v1166 = vmul.f32 %v508, %v1162
        %v1170 = vrot.slane %v1164, 3
        %v1171 = vrot.slane %v1165, 3
        %v1172 = vsel %vm1033, %v1170, %v1171
        %v1173 = vrot.slane %v1166, 3
        %v1174 = vsel %vm1033, %v1171, %v1173
        %1175 = vrot.lane.b32.xlu0 %v1172, 123
        %v1176 = vpop.permute.xlu0 %1175
        %1177 = vrot.lane.b32.xlu0 %v1174, 123
        %v1178 = vpop.permute.xlu0 %1177
        %v1181 = vadd.f32 %v1153, %v1176
        %v1182 = vadd.f32 %v1154, %v1178
        %v1183 = vld [vmem:[%s0 + $0x1b] sm:$0x1]
        %v1184 = vlaneseq
        %v1185 = vshrl.u32 %v1184, 7
        %v1186 = vsub.s32 0, %v1185
        %v1187 = vrot.slane %v1183, %v1186
        %1189 = vrot.lane.b32.xlu0 %v1187, 6
        %v1190 = vpop.permute.xlu0 %1189
        %v1192 = vmul.f32 %v506, %v1190
        %v1193 = vmul.f32 %v507, %v1190
        %v1194 = vmul.f32 %v508, %v1190
        %v1198 = vrot.slane %v1192, 3
        %v1199 = vrot.slane %v1193, 3
        %v1200 = vsel %vm1033, %v1198, %v1199
        %v1201 = vrot.slane %v1194, 3
        %v1202 = vsel %vm1033, %v1199, %v1201
        %1203 = vrot.lane.b32.xlu0 %v1200, 122
        %v1204 = vpop.permute.xlu0 %1203
        %1205 = vrot.lane.b32.xlu0 %v1202, 122
        %v1206 = vpop.permute.xlu0 %1205
        %v1209 = vadd.f32 %v1181, %v1204
        %v1210 = vadd.f32 %v1182, %v1206
        %v1211 = vld [vmem:[%s0 + $0x1c] sm:$0x1]
        %v1212 = vlaneseq
        %v1213 = vshrl.u32 %v1212, 7
        %v1214 = vsub.s32 0, %v1213
        %v1215 = vrot.slane %v1211, %v1214
        %v1216 = vmul.f32 %v506, %v1215
        %v1217 = vmul.f32 %v507, %v1215
        %v1218 = vmul.f32 %v508, %v1215
        %vm1222 = vcmask 1043456
        %v1223 = vrot.slane %v1216, 4
        %v1224 = vrot.slane %v1217, 4
        %v1225 = vsel %vm1222, %v1223, %v1224
        %v1226 = vrot.slane %v1218, 4
        %v1227 = vsel %vm1222, %v1224, %v1226
        %v1230 = vadd.f32 %v1209, %v1225
        %v1231 = vadd.f32 %v1210, %v1227
        %v1232 = vld [vmem:[%s0 + $0x1d] sm:$0x1]
        %v1233 = vlaneseq
        %v1234 = vshrl.u32 %v1233, 7
        %v1235 = vsub.s32 0, %v1234
        %v1236 = vrot.slane %v1232, %v1235
        %1238 = vrot.lane.b32.xlu0 %v1236, 1
        %v1239 = vpop.permute.xlu0 %1238
        %v1241 = vmul.f32 %v506, %v1239
        %v1242 = vmul.f32 %v507, %v1239
        %v1243 = vmul.f32 %v508, %v1239
        %v1247 = vrot.slane %v1241, 4
        %v1248 = vrot.slane %v1242, 4
        %v1249 = vsel %vm1222, %v1247, %v1248
        %v1250 = vrot.slane %v1243, 4
        %v1251 = vsel %vm1222, %v1248, %v1250
        %1252 = vrot.lane.b32.xlu0 %v1249, 127
        %v1253 = vpop.permute.xlu0 %1252
        %1254 = vrot.lane.b32.xlu0 %v1251, 127
        %v1255 = vpop.permute.xlu0 %1254
        %v1258 = vadd.f32 %v1230, %v1253
        %v1259 = vadd.f32 %v1231, %v1255
        %v1260 = vld [vmem:[%s0 + $0x1e] sm:$0x1]
        %v1261 = vlaneseq
        %v1262 = vshrl.u32 %v1261, 7
        %v1263 = vsub.s32 0, %v1262
        %v1264 = vrot.slane %v1260, %v1263
        %1266 = vrot.lane.b32.xlu0 %v1264, 2
        %v1267 = vpop.permute.xlu0 %1266
        %v1269 = vmul.f32 %v506, %v1267
        %v1270 = vmul.f32 %v507, %v1267
        %v1271 = vmul.f32 %v508, %v1267
        %v1275 = vrot.slane %v1269, 4
        %v1276 = vrot.slane %v1270, 4
        %v1277 = vsel %vm1222, %v1275, %v1276
        %v1278 = vrot.slane %v1271, 4
        %v1279 = vsel %vm1222, %v1276, %v1278
        %1280 = vrot.lane.b32.xlu0 %v1277, 126
        %v1281 = vpop.permute.xlu0 %1280
        %1282 = vrot.lane.b32.xlu0 %v1279, 126
        %v1283 = vpop.permute.xlu0 %1282
        %v1286 = vadd.f32 %v1258, %v1281
        %v1287 = vadd.f32 %v1259, %v1283
        %v1288 = vld [vmem:[%s0 + $0x1f] sm:$0x1]
        %v1289 = vlaneseq
        %v1290 = vshrl.u32 %v1289, 7
        %v1291 = vsub.s32 0, %v1290
        %v1292 = vrot.slane %v1288, %v1291
        %1294 = vrot.lane.b32.xlu0 %v1292, 3
        %v1295 = vpop.permute.xlu0 %1294
        %v1297 = vmul.f32 %v506, %v1295
        %v1298 = vmul.f32 %v507, %v1295
        %v1299 = vmul.f32 %v508, %v1295
        %v1303 = vrot.slane %v1297, 4
        %v1304 = vrot.slane %v1298, 4
        %v1305 = vsel %vm1222, %v1303, %v1304
        %v1306 = vrot.slane %v1299, 4
        %v1307 = vsel %vm1222, %v1304, %v1306
        %1308 = vrot.lane.b32.xlu0 %v1305, 125
        %v1309 = vpop.permute.xlu0 %1308
        %1310 = vrot.lane.b32.xlu0 %v1307, 125
        %v1311 = vpop.permute.xlu0 %1310
        %v1314 = vadd.f32 %v1286, %v1309
        %v1315 = vadd.f32 %v1287, %v1311
        %v1316 = vld [vmem:[%s0 + $0x20] sm:$0x1]
        %v1317 = vlaneseq
        %v1318 = vshrl.u32 %v1317, 7
        %v1319 = vsub.s32 0, %v1318
        %v1320 = vrot.slane %v1316, %v1319
        %1322 = vrot.lane.b32.xlu0 %v1320, 4
        %v1323 = vpop.permute.xlu0 %1322
        %v1325 = vmul.f32 %v506, %v1323
        %v1326 = vmul.f32 %v507, %v1323
        %v1327 = vmul.f32 %v508, %v1323
        %v1331 = vrot.slane %v1325, 4
        %v1332 = vrot.slane %v1326, 4
        %v1333 = vsel %vm1222, %v1331, %v1332
        %v1334 = vrot.slane %v1327, 4
        %v1335 = vsel %vm1222, %v1332, %v1334
        %1336 = vrot.lane.b32.xlu0 %v1333, 124
        %v1337 = vpop.permute.xlu0 %1336
        %1338 = vrot.lane.b32.xlu0 %v1335, 124
        %v1339 = vpop.permute.xlu0 %1338
        %v1342 = vadd.f32 %v1314, %v1337
        %v1343 = vadd.f32 %v1315, %v1339
        %v1344 = vld [vmem:[%s0 + $0x21] sm:$0x1]
        %v1345 = vlaneseq
        %v1346 = vshrl.u32 %v1345, 7
        %v1347 = vsub.s32 0, %v1346
        %v1348 = vrot.slane %v1344, %v1347
        %1350 = vrot.lane.b32.xlu0 %v1348, 5
        %v1351 = vpop.permute.xlu0 %1350
        %v1353 = vmul.f32 %v506, %v1351
        %v1354 = vmul.f32 %v507, %v1351
        %v1355 = vmul.f32 %v508, %v1351
        %v1359 = vrot.slane %v1353, 4
        %v1360 = vrot.slane %v1354, 4
        %v1361 = vsel %vm1222, %v1359, %v1360
        %v1362 = vrot.slane %v1355, 4
        %v1363 = vsel %vm1222, %v1360, %v1362
        %1364 = vrot.lane.b32.xlu0 %v1361, 123
        %v1365 = vpop.permute.xlu0 %1364
        %1366 = vrot.lane.b32.xlu0 %v1363, 123
        %v1367 = vpop.permute.xlu0 %1366
        %v1370 = vadd.f32 %v1342, %v1365
        %v1371 = vadd.f32 %v1343, %v1367
        %v1372 = vld [vmem:[%s0 + $0x22] sm:$0x1]
        %v1373 = vlaneseq
        %v1374 = vshrl.u32 %v1373, 7
        %v1375 = vsub.s32 0, %v1374
        %v1376 = vrot.slane %v1372, %v1375
        %1378 = vrot.lane.b32.xlu0 %v1376, 6
        %v1379 = vpop.permute.xlu0 %1378
        %v1381 = vmul.f32 %v506, %v1379
        %v1382 = vmul.f32 %v507, %v1379
        %v1383 = vmul.f32 %v508, %v1379
        %v1387 = vrot.slane %v1381, 4
        %v1388 = vrot.slane %v1382, 4
        %v1389 = vsel %vm1222, %v1387, %v1388
        %v1390 = vrot.slane %v1383, 4
        %v1391 = vsel %vm1222, %v1388, %v1390
        %1392 = vrot.lane.b32.xlu0 %v1389, 122
        %v1393 = vpop.permute.xlu0 %1392
        %1394 = vrot.lane.b32.xlu0 %v1391, 122
        %v1395 = vpop.permute.xlu0 %1394
        %v1398 = vadd.f32 %v1370, %v1393
        %v1399 = vadd.f32 %v1371, %v1395
        %v1400 = vld [vmem:[%s0 + $0x23] sm:$0x1]
        %v1401 = vlaneseq
        %v1402 = vshrl.u32 %v1401, 7
        %v1403 = vsub.s32 0, %v1402
        %v1404 = vrot.slane %v1400, %v1403
        %v1405 = vmul.f32 %v506, %v1404
        %v1406 = vmul.f32 %v507, %v1404
        %v1407 = vmul.f32 %v508, %v1404
        %vm1411 = vcmask 1042432
        %v1412 = vrot.slane %v1405, 5
        %v1413 = vrot.slane %v1406, 5
        %v1414 = vsel %vm1411, %v1412, %v1413
        %v1415 = vrot.slane %v1407, 5
        %v1416 = vsel %vm1411, %v1413, %v1415
        %v1419 = vadd.f32 %v1398, %v1414
        %v1420 = vadd.f32 %v1399, %v1416
        %v1421 = vld [vmem:[%s0 + $0x24] sm:$0x1]
        %v1422 = vlaneseq
        %v1423 = vshrl.u32 %v1422, 7
        %v1424 = vsub.s32 0, %v1423
        %v1425 = vrot.slane %v1421, %v1424
        %1427 = vrot.lane.b32.xlu0 %v1425, 1
        %v1428 = vpop.permute.xlu0 %1427
        %v1430 = vmul.f32 %v506, %v1428
        %v1431 = vmul.f32 %v507, %v1428
        %v1432 = vmul.f32 %v508, %v1428
        %v1436 = vrot.slane %v1430, 5
        %v1437 = vrot.slane %v1431, 5
        %v1438 = vsel %vm1411, %v1436, %v1437
        %v1439 = vrot.slane %v1432, 5
        %v1440 = vsel %vm1411, %v1437, %v1439
        %1441 = vrot.lane.b32.xlu0 %v1438, 127
        %v1442 = vpop.permute.xlu0 %1441
        %1443 = vrot.lane.b32.xlu0 %v1440, 127
        %v1444 = vpop.permute.xlu0 %1443
        %v1447 = vadd.f32 %v1419, %v1442
        %v1448 = vadd.f32 %v1420, %v1444
        %v1449 = vld [vmem:[%s0 + $0x25] sm:$0x1]
        %v1450 = vlaneseq
        %v1451 = vshrl.u32 %v1450, 7
        %v1452 = vsub.s32 0, %v1451
        %v1453 = vrot.slane %v1449, %v1452
        %1455 = vrot.lane.b32.xlu0 %v1453, 2
        %v1456 = vpop.permute.xlu0 %1455
        %v1458 = vmul.f32 %v506, %v1456
        %v1459 = vmul.f32 %v507, %v1456
        %v1460 = vmul.f32 %v508, %v1456
        %v1464 = vrot.slane %v1458, 5
        %v1465 = vrot.slane %v1459, 5
        %v1466 = vsel %vm1411, %v1464, %v1465
        %v1467 = vrot.slane %v1460, 5
        %v1468 = vsel %vm1411, %v1465, %v1467
        %1469 = vrot.lane.b32.xlu0 %v1466, 126
        %v1470 = vpop.permute.xlu0 %1469
        %1471 = vrot.lane.b32.xlu0 %v1468, 126
        %v1472 = vpop.permute.xlu0 %1471
        %v1475 = vadd.f32 %v1447, %v1470
        %v1476 = vadd.f32 %v1448, %v1472
        %v1477 = vld [vmem:[%s0 + $0x26] sm:$0x1]
        %v1478 = vlaneseq
        %v1479 = vshrl.u32 %v1478, 7
        %v1480 = vsub.s32 0, %v1479
        %v1481 = vrot.slane %v1477, %v1480
        %1483 = vrot.lane.b32.xlu0 %v1481, 3
        %v1484 = vpop.permute.xlu0 %1483
        %v1486 = vmul.f32 %v506, %v1484
        %v1487 = vmul.f32 %v507, %v1484
        %v1488 = vmul.f32 %v508, %v1484
        %v1492 = vrot.slane %v1486, 5
        %v1493 = vrot.slane %v1487, 5
        %v1494 = vsel %vm1411, %v1492, %v1493
        %v1495 = vrot.slane %v1488, 5
        %v1496 = vsel %vm1411, %v1493, %v1495
        %1497 = vrot.lane.b32.xlu0 %v1494, 125
        %v1498 = vpop.permute.xlu0 %1497
        %1499 = vrot.lane.b32.xlu0 %v1496, 125
        %v1500 = vpop.permute.xlu0 %1499
        %v1503 = vadd.f32 %v1475, %v1498
        %v1504 = vadd.f32 %v1476, %v1500
        %v1505 = vld [vmem:[%s0 + $0x27] sm:$0x1]
        %v1506 = vlaneseq
        %v1507 = vshrl.u32 %v1506, 7
        %v1508 = vsub.s32 0, %v1507
        %v1509 = vrot.slane %v1505, %v1508
        %1511 = vrot.lane.b32.xlu0 %v1509, 4
        %v1512 = vpop.permute.xlu0 %1511
        %v1514 = vmul.f32 %v506, %v1512
        %v1515 = vmul.f32 %v507, %v1512
        %v1516 = vmul.f32 %v508, %v1512
        %v1520 = vrot.slane %v1514, 5
        %v1521 = vrot.slane %v1515, 5
        %v1522 = vsel %vm1411, %v1520, %v1521
        %v1523 = vrot.slane %v1516, 5
        %v1524 = vsel %vm1411, %v1521, %v1523
        %1525 = vrot.lane.b32.xlu0 %v1522, 124
        %v1526 = vpop.permute.xlu0 %1525
        %1527 = vrot.lane.b32.xlu0 %v1524, 124
        %v1528 = vpop.permute.xlu0 %1527
        %v1531 = vadd.f32 %v1503, %v1526
        %v1532 = vadd.f32 %v1504, %v1528
        %v1533 = vld [vmem:[%s0 + $0x28] sm:$0x1]
        %v1534 = vlaneseq
        %v1535 = vshrl.u32 %v1534, 7
        %v1536 = vsub.s32 0, %v1535
        %v1537 = vrot.slane %v1533, %v1536
        %1539 = vrot.lane.b32.xlu0 %v1537, 5
        %v1540 = vpop.permute.xlu0 %1539
        %v1542 = vmul.f32 %v506, %v1540
        %v1543 = vmul.f32 %v507, %v1540
        %v1544 = vmul.f32 %v508, %v1540
        %v1548 = vrot.slane %v1542, 5
        %v1549 = vrot.slane %v1543, 5
        %v1550 = vsel %vm1411, %v1548, %v1549
        %v1551 = vrot.slane %v1544, 5
        %v1552 = vsel %vm1411, %v1549, %v1551
        %1553 = vrot.lane.b32.xlu0 %v1550, 123
        %v1554 = vpop.permute.xlu0 %1553
        %1555 = vrot.lane.b32.xlu0 %v1552, 123
        %v1556 = vpop.permute.xlu0 %1555
        %v1559 = vadd.f32 %v1531, %v1554
        %v1560 = vadd.f32 %v1532, %v1556
        %v1561 = vld [vmem:[%s0 + $0x29] sm:$0x1]
        %v1562 = vlaneseq
        %v1563 = vshrl.u32 %v1562, 7
        %v1564 = vsub.s32 0, %v1563
        %v1565 = vrot.slane %v1561, %v1564
        %1567 = vrot.lane.b32.xlu0 %v1565, 6
        %v1568 = vpop.permute.xlu0 %1567
        %v1570 = vmul.f32 %v506, %v1568
        %v1571 = vmul.f32 %v507, %v1568
        %v1572 = vmul.f32 %v508, %v1568
        %v1576 = vrot.slane %v1570, 5
        %v1577 = vrot.slane %v1571, 5
        %v1578 = vsel %vm1411, %v1576, %v1577
        %v1579 = vrot.slane %v1572, 5
        %v1580 = vsel %vm1411, %v1577, %v1579
        %1581 = vrot.lane.b32.xlu0 %v1578, 122
        %v1582 = vpop.permute.xlu0 %1581
        %1583 = vrot.lane.b32.xlu0 %v1580, 122
        %v1584 = vpop.permute.xlu0 %1583
        %v1587 = vadd.f32 %v1559, %v1582
        %v1588 = vadd.f32 %v1560, %v1584
        %v1589 = vld [vmem:[%s0 + $0x2a] sm:$0x1]
        %v1590 = vlaneseq
        %v1591 = vshrl.u32 %v1590, 7
        %v1592 = vsub.s32 0, %v1591
        %v1593 = vrot.slane %v1589, %v1592
        %v1594 = vmul.f32 %v506, %v1593
        %v1595 = vmul.f32 %v507, %v1593
        %v1596 = vmul.f32 %v508, %v1593
        %vm1600 = vcmask 1041408
        %v1601 = vrot.slane %v1594, 6
        %v1602 = vrot.slane %v1595, 6
        %v1603 = vsel %vm1600, %v1601, %v1602
        %v1604 = vrot.slane %v1596, 6
        %v1605 = vsel %vm1600, %v1602, %v1604
        %v1608 = vadd.f32 %v1587, %v1603
        %v1609 = vadd.f32 %v1588, %v1605
        %v1610 = vld [vmem:[%s0 + $0x2b] sm:$0x1]
        %v1611 = vlaneseq
        %v1612 = vshrl.u32 %v1611, 7
        %v1613 = vsub.s32 0, %v1612
        %v1614 = vrot.slane %v1610, %v1613
        %1616 = vrot.lane.b32.xlu0 %v1614, 1
        %v1617 = vpop.permute.xlu0 %1616
        %v1619 = vmul.f32 %v506, %v1617
        %v1620 = vmul.f32 %v507, %v1617
        %v1621 = vmul.f32 %v508, %v1617
        %v1625 = vrot.slane %v1619, 6
        %v1626 = vrot.slane %v1620, 6
        %v1627 = vsel %vm1600, %v1625, %v1626
        %v1628 = vrot.slane %v1621, 6
        %v1629 = vsel %vm1600, %v1626, %v1628
        %1630 = vrot.lane.b32.xlu0 %v1627, 127
        %v1631 = vpop.permute.xlu0 %1630
        %1632 = vrot.lane.b32.xlu0 %v1629, 127
        %v1633 = vpop.permute.xlu0 %1632
        %v1636 = vadd.f32 %v1608, %v1631
        %v1637 = vadd.f32 %v1609, %v1633
        %v1638 = vld [vmem:[%s0 + $0x2c] sm:$0x1]
        %v1639 = vlaneseq
        %v1640 = vshrl.u32 %v1639, 7
        %v1641 = vsub.s32 0, %v1640
        %v1642 = vrot.slane %v1638, %v1641
        %1644 = vrot.lane.b32.xlu0 %v1642, 2
        %v1645 = vpop.permute.xlu0 %1644
        %v1647 = vmul.f32 %v506, %v1645
        %v1648 = vmul.f32 %v507, %v1645
        %v1649 = vmul.f32 %v508, %v1645
        %v1653 = vrot.slane %v1647, 6
        %v1654 = vrot.slane %v1648, 6
        %v1655 = vsel %vm1600, %v1653, %v1654
        %v1656 = vrot.slane %v1649, 6
        %v1657 = vsel %vm1600, %v1654, %v1656
        %1658 = vrot.lane.b32.xlu0 %v1655, 126
        %v1659 = vpop.permute.xlu0 %1658
        %1660 = vrot.lane.b32.xlu0 %v1657, 126
        %v1661 = vpop.permute.xlu0 %1660
        %v1664 = vadd.f32 %v1636, %v1659
        %v1665 = vadd.f32 %v1637, %v1661
        %v1666 = vld [vmem:[%s0 + $0x2d] sm:$0x1]
        %v1667 = vlaneseq
        %v1668 = vshrl.u32 %v1667, 7
        %v1669 = vsub.s32 0, %v1668
        %v1670 = vrot.slane %v1666, %v1669
        %1672 = vrot.lane.b32.xlu0 %v1670, 3
        %v1673 = vpop.permute.xlu0 %1672
        %v1675 = vmul.f32 %v506, %v1673
        %v1676 = vmul.f32 %v507, %v1673
        %v1677 = vmul.f32 %v508, %v1673
        %v1681 = vrot.slane %v1675, 6
        %v1682 = vrot.slane %v1676, 6
        %v1683 = vsel %vm1600, %v1681, %v1682
        %v1684 = vrot.slane %v1677, 6
        %v1685 = vsel %vm1600, %v1682, %v1684
        %1686 = vrot.lane.b32.xlu0 %v1683, 125
        %v1687 = vpop.permute.xlu0 %1686
        %1688 = vrot.lane.b32.xlu0 %v1685, 125
        %v1689 = vpop.permute.xlu0 %1688
        %v1692 = vadd.f32 %v1664, %v1687
        %v1693 = vadd.f32 %v1665, %v1689
        %v1694 = vld [vmem:[%s0 + $0x2e] sm:$0x1]
        %v1695 = vlaneseq
        %v1696 = vshrl.u32 %v1695, 7
        %v1697 = vsub.s32 0, %v1696
        %v1698 = vrot.slane %v1694, %v1697
        %1700 = vrot.lane.b32.xlu0 %v1698, 4
        %v1701 = vpop.permute.xlu0 %1700
        %v1703 = vmul.f32 %v506, %v1701
        %v1704 = vmul.f32 %v507, %v1701
        %v1705 = vmul.f32 %v508, %v1701
        %v1709 = vrot.slane %v1703, 6
        %v1710 = vrot.slane %v1704, 6
        %v1711 = vsel %vm1600, %v1709, %v1710
        %v1712 = vrot.slane %v1705, 6
        %v1713 = vsel %vm1600, %v1710, %v1712
        %1714 = vrot.lane.b32.xlu0 %v1711, 124
        %v1715 = vpop.permute.xlu0 %1714
        %1716 = vrot.lane.b32.xlu0 %v1713, 124
        %v1717 = vpop.permute.xlu0 %1716
        %v1720 = vadd.f32 %v1692, %v1715
        %v1721 = vadd.f32 %v1693, %v1717
        %v1722 = vld [vmem:[%s0 + $0x2f] sm:$0x1]
        %v1723 = vlaneseq
        %v1724 = vshrl.u32 %v1723, 7
        %v1725 = vsub.s32 0, %v1724
        %v1726 = vrot.slane %v1722, %v1725
        %1728 = vrot.lane.b32.xlu0 %v1726, 5
        %v1729 = vpop.permute.xlu0 %1728
        %v1731 = vmul.f32 %v506, %v1729
        %v1732 = vmul.f32 %v507, %v1729
        %v1733 = vmul.f32 %v508, %v1729
        %v1737 = vrot.slane %v1731, 6
        %v1738 = vrot.slane %v1732, 6
        %v1739 = vsel %vm1600, %v1737, %v1738
        %v1740 = vrot.slane %v1733, 6
        %v1741 = vsel %vm1600, %v1738, %v1740
        %1742 = vrot.lane.b32.xlu0 %v1739, 123
        %v1743 = vpop.permute.xlu0 %1742
        %1744 = vrot.lane.b32.xlu0 %v1741, 123
        %v1745 = vpop.permute.xlu0 %1744
        %v1748 = vadd.f32 %v1720, %v1743
        %v1749 = vadd.f32 %v1721, %v1745
        %v1750 = vld [vmem:[%s0 + $0x30] sm:$0x1]
        %v1751 = vlaneseq
        %v1752 = vshrl.u32 %v1751, 7
        %v1753 = vsub.s32 0, %v1752
        %v1754 = vrot.slane %v1750, %v1753
        %1756 = vrot.lane.b32.xlu0 %v1754, 6
        %v1757 = vpop.permute.xlu0 %1756
        %v1759 = vmul.f32 %v506, %v1757
        %v1760 = vmul.f32 %v507, %v1757
        %v1761 = vmul.f32 %v508, %v1757
        %v1765 = vrot.slane %v1759, 6
        %v1766 = vrot.slane %v1760, 6
        %v1767 = vsel %vm1600, %v1765, %v1766
        %v1768 = vrot.slane %v1761, 6
        %v1769 = vsel %vm1600, %v1766, %v1768
        %1770 = vrot.lane.b32.xlu0 %v1767, 122
        %v1771 = vpop.permute.xlu0 %1770
        %1772 = vrot.lane.b32.xlu0 %v1769, 122
        %v1773 = vpop.permute.xlu0 %1772
        %v1776 = vadd.f32 %v1748, %v1771
        %v1777 = vadd.f32 %v1749, %v1773
        %1780 = vrot.lane.b32.xlu0 %v1776, 106
        %v1781 = vpop.permute.xlu0 %1780
        %1782 = vrot.lane.b32.xlu0 %v1777, 106
        %v1783 = vpop.permute.xlu0 %1782
        %v1786 = vadd.f32 %v1776, %v1781
        %v1787 = vadd.f32 %v1777, %v1783
        %s1788 = sld [smem:[#allocation3]]
        %v1789 = vstv %s1788
        %v1790 = vadd.f32 %v1786, %v1789
        %v1791 = vadd.f32 %v1787, %v1789
        %vm1792 = vcmask 130048
        %1793 = vst.msk [vmem:[%s189] sm:$0xff] %vm1792, %v1790
        %1794 = vst.msk [vmem:[%s189 + $0x8] sm:$0xff] %vm1792, %v1791
        %s1795 = sand.u32 %s97, 1
        %s1796 = scalar_lea.sflag [#allocation6], %s1795
        %s1797 = sand.u32 %s97, 1
        %s1798 = smul.addr %s1797, 16
        %s1799 = scalar_lea.vmem [#allocation7], %s1798
        // Predicated region
        $region37: #{tpu_custom_call.1} parent=31 // pred_check
          %p1800 = pneg %p107
        $region38: #{tpu_custom_call.1} parent=31 // pred_check_branch
          %1802 = sbr.rel (%p1800) target = $region40
        $region39: #{tpu_custom_call.1} parent=31 // pred_region
          %s1804 = ssub.s32 256, 256
          %1805 = vsyncadd %s1796, %s1804
          %s1806 = smul.addr %s21, 2
          %s1807 = smul.addr %s1806, 128
          %s1808 = scalar_lea.hbm %s3, %s1807
          %s1809 = sshll.u32 %s1799, 4
          %s1810 = int_to_ptr.vmem [resolvable:$true] %s1809
          %1815 = dma.vmem_to_hbm [thread:$0]  %s1810, 256, %s1808, %s1796, 128, 128, 8
        $region40: #{tpu_custom_call.1} parent=31 // pred_fallthru
          _
      $region32: #{tpu_custom_call.1} parent=5 // pred_fallthru
        _
      %p1816 = scmp.le.s32.totalorder 2, %s16
      // Predicated region
      $region41: #{tpu_custom_call.1} parent=5 // pred_check
        %p1817 = pneg %p1816
      $region42: #{tpu_custom_call.1} parent=5 // pred_check_branch
        %1819 = sbr.rel (%p1817) target = $region44
      $region43: #{tpu_custom_call.1} parent=5 // pred_region
        %s1820 = ssub.s32 %s16, 2
        // Predicated region
        $region45: #{tpu_custom_call.1} parent=43 // pred_check
          %p1821 = pneg %p113
        $region46: #{tpu_custom_call.1} parent=43 // pred_check_branch
          %1823 = sbr.rel (%p1821) target = $region48
        $region47: #{tpu_custom_call.1} parent=43 // pred_region
          %s1824 = sand.u32 %s98, 1
          %s1825 = scalar_lea.sflag [#allocation6], %s1824
          %s1826 = sand.u32 %s98, 1
          %s1827 = smul.addr %s1826, 16
          %s1828 = scalar_lea.vmem [#allocation7], %s1827
          %1829 = dma.done %s1825, 256
        $region48: #{tpu_custom_call.1} parent=43 // pred_fallthru
          _
      $region44: #{tpu_custom_call.1} parent=5 // pred_fallthru
        _
    $region6: #{tpu_custom_call.1} parent=1 // loop_footer
      %s20 = sadd.s32 1, %s16
    $region7: #{tpu_custom_call.1} parent=1 // loop_footer_branch
      %15 = sbr.rel target = $region3
    $region8: #{tpu_custom_call.1} parent=1 // loop_exit
      _
    %1830 = vsyncpa [#allocation5], 1
    %s1831 = scalar_lea.sflag [#allocation5], 1
    %1832 = vsyncpa %s1831, 1
    %1833 = vsyncpa [#allocation6], 1
    %s1834 = scalar_lea.sflag [#allocation6], 1
    %1835 = vsyncpa %s1834, 1

</llo_original>
